<compile_context>
chip_gen: v6e
topology: v6e:2x2x1
jax: 0.10.0
libtpu: 0.0.40
codegen_flags: <defaults>
</compile_context>

<pallas_src>
import functools

import jax
import jax.numpy as jnp
from jax import lax
from jax.experimental import pallas as pl
from jax.experimental.pallas import tpu as pltpu


def _convlstm_kernel(x_ref, w_ref, b_ref, mask_ref, y_ref,
                     xh_ref, im_ref, c_ref,
                     *, Cin, Cout, K, Wp, S, T, Cio_p, base_off, margin_l,
                     act_dtype):
    """One batch element: the full T-step ConvLSTM recurrence in VMEM."""
    # Zero the stacked conv-source buffer (h rows, zero-pad rows, lane margins)
    # and the cell state.  Each grid step is an independent batch element, so
    # this runs unconditionally (no pl.when / grid-order dependence).
    xh_ref[...] = jnp.zeros_like(xh_ref)
    c_ref[...] = jnp.zeros_like(c_ref)

    def sigm(v):
        # sigmoid as a single EUP push: sigmoid(x) = 0.5*tanh(0.5*x) + 0.5
        return 0.5 * jnp.tanh(0.5 * v) + 0.5

    def step(t, carry):
        # Stream this timestep's (padded, flattened, lane-extended) input into
        # the x rows of the stacked [h ; x ; 0-pad] buffer.
        xh_ref[Cout:Cout + Cin, :] = x_ref[t]

        # im2col: K*K lane-shifted copies of the stacked buffer, stacked on the
        # sublane axis (each band is Cio_p rows, 8-aligned).  Copies run on
        # ld/st/XLU slots; the conv itself is ONE deep MXU matmul below.
        for tap in range(K * K):
            di, dj = tap // K, tap % K
            off = base_off + di * Wp + dj                 # static lane offset
            im_ref[tap * Cio_p:(tap + 1) * Cio_p, :] = xh_ref[:, off:off + S]

        # Fused x-conv + h-conv for all 4 gates:
        # (4*Cout, K*K*Cio_p) x (K*K*Cio_p, S) -> (4*Cout, S), f32 accumulate.
        gates = jnp.dot(w_ref[...], im_ref[...],
                        preferred_element_type=jnp.float32) + b_ref[...]

        # Gate nonlinearities (bf16 on v6e/v7x, f32 on v5e); sublane slices at
        # multiples of Cout are free relayouts.
        g = gates.astype(act_dtype)
        ingate = sigm(g[0 * Cout:1 * Cout])
        forgetgate = sigm(g[1 * Cout:2 * Cout])
        cellgate = jnp.tanh(g[2 * Cout:3 * Cout])         # activation[0]=tanh
        outgate = sigm(g[3 * Cout:4 * Cout])

        # Recurrence accumulation stays f32.  The mask keeps the conv's zero
        # padding ring of the state at exactly zero (so h's ring is 0 too).
        c_new = (forgetgate.astype(jnp.float32) * c_ref[...]
                 + (ingate * cellgate).astype(jnp.float32)) * mask_ref[...]
        h_new = outgate * jnp.tanh(c_new.astype(act_dtype))   # activation[1]

        c_ref[...] = c_new
        y_ref[t] = h_new.astype(y_ref.dtype)
        # Write h back (bf16, lane-aligned start) for the next timestep's conv.
        xh_ref[0:Cout, margin_l:margin_l + S] = h_new.astype(xh_ref.dtype)
        return carry

    lax.fori_loop(0, T, step, 0)


def cell_forward(params, x, cell_info):
    """Forward of Cell({'cell': 'ConvLSTMCell', ...}) with zero initial state."""
    squeeze = (x.ndim == 4)
    if squeeze:
        x = x[:, None]
    B, T, Cin, H, W = x.shape
    Cout = cell_info['output_size']
    K = cell_info['kernel_size']
    pad = cell_info['padding']
    assert cell_info['stride'] == 1 and 2 * pad == K - 1, 'same-conv only'
    assert cell_info['num_layers'] == 1, 'single layer only'
    assert cell_info['activation'] == 'tanh'

    Hp, Wp = H + 2 * pad, W + 2 * pad
    S = Hp * Wp                            # padded, flattened spatial extent
    margin = pad * (Wp + 1)                # minimum halo so tap slices are >= 0
    margin_l = ((margin + 127) // 128) * 128   # lane-aligned h write-back
    margin_r = margin
    SE = margin_l + S + margin_r
    base_off = margin_l - margin           # tap 0 lane offset

    Cio = Cout + Cin
    Cio_p = ((Cio + 7) // 8) * 8           # 8-aligned sublane band per tap

    # Input: NCHW -> zero-padded -> flattened -> lane-extended bf16 (B,T,Cin,SE)
    xp = jnp.pad(x, ((0, 0), (0, 0), (0, 0), (pad, pad), (pad, pad)))
    xf = xp.reshape(B, T, Cin, S)
    x_ext = jnp.pad(xf, ((0, 0), (0, 0), (0, 0), (margin_l, margin_r)))
    x_ext = x_ext.astype(jnp.bfloat16)

    # Weights: per-tap [Wh | Wx | 0-pad] columns packed into ONE lane-dense
    # (4*Cout, K*K*Cio_p) bf16 matrix -> a single matmul per timestep.
    w_cat = jnp.concatenate([params['wh'], params['wx']], axis=1)  # (4C,Cio,K,K)
    w_perm = jnp.transpose(w_cat, (0, 2, 3, 1))                    # (4C,K,K,Cio)
    w_perm = jnp.pad(w_perm, ((0, 0), (0, 0), (0, 0), (0, Cio_p - Cio)))
    w_packed = w_perm.reshape(4 * Cout, K * K * Cio_p).astype(jnp.bfloat16)

    b_fold = (params['bx'] + params['bh']).astype(jnp.float32)
    b_fold = b_fold.reshape(4 * Cout, 1)

    # Interior mask over the padded-flattened spatial axis (1 inside, 0 ring).
    q = jnp.arange(S)
    rows, cols = q // Wp, q % Wp
    interior = ((rows >= pad) & (rows < pad + H) &
                (cols >= pad) & (cols < pad + W))
    mask = interior.astype(jnp.float32).reshape(1, S)

    # bf16 gate math only where the VPU/EUP support it (v6e / v7x); f32 else.
    try:
        kind = jax.devices()[0].device_kind.lower()
    except Exception:  # pragma: no cover
        kind = ''
    act_dtype = jnp.bfloat16 if ('v6' in kind or 'v7' in kind) else jnp.float32

    kernel = functools.partial(_convlstm_kernel, Cin=Cin, Cout=Cout, K=K,
                               Wp=Wp, S=S, T=T, Cio_p=Cio_p,
                               base_off=base_off, margin_l=margin_l,
                               act_dtype=act_dtype)

    y_flat = pl.pallas_call(
        kernel,
        out_shape=jax.ShapeDtypeStruct((B, T, Cout, S), jnp.float32),
        grid_spec=pltpu.PrefetchScalarGridSpec(
            num_scalar_prefetch=0,
            grid=(B,),
            in_specs=[
                pl.BlockSpec((None, T, Cin, SE), lambda b: (b, 0, 0, 0)),
                pl.BlockSpec((4 * Cout, K * K * Cio_p), lambda b: (0, 0)),
                pl.BlockSpec((4 * Cout, 1), lambda b: (0, 0)),
                pl.BlockSpec((1, S), lambda b: (0, 0)),
            ],
            out_specs=pl.BlockSpec((None, T, Cout, S), lambda b: (b, 0, 0, 0)),
            scratch_shapes=[
                pltpu.VMEM((Cio_p, SE), jnp.bfloat16),          # [h ; x ; 0]
                pltpu.VMEM((K * K * Cio_p, S), jnp.bfloat16),   # im2col buffer
                pltpu.VMEM((Cout, S), jnp.float32),             # cell state c
            ],
        ),
        compiler_params=pltpu.CompilerParams(
            dimension_semantics=("parallel",),
        ),
    )(x_ext, w_packed, b_fold, mask)

    # (B, T, Cout, S) -> NCHW (B, T, Cout, H, W): drop the padding ring.
    y = y_flat.reshape(B, T, Cout, Hp, Wp)[:, :, :, pad:pad + H, pad:pad + W]
    if squeeze:
        y = y[:, 0]
    return y


# ----------------------------------------------------------------------------
# Pure-JAX reference (lax.conv, f32), used only to validate the Pallas path.
# ----------------------------------------------------------------------------
def cell_forward_ref(params, x, cell_info):
    squeeze = (x.ndim == 4)
    if squeeze:
        x = x[:, None]
    B, T, Cin, H, W = x.shape
    Cout = cell_info['output_size']
    pad = cell_info['padding']

    def conv(z, w, bias):
        y = lax.conv_general_dilated(
            z, w, window_strides=(1, 1), padding=[(pad, pad), (pad, pad)],
            dimension_numbers=('NCHW', 'OIHW', 'NCHW'))
        return y + bias[None, :, None, None]

    h = jnp.zeros((B, Cout, H, W), jnp.float32)
    c = jnp.zeros((B, Cout, H, W), jnp.float32)
    ys = []
    for t in range(T):
        gates = conv(x[:, t], params['wx'], params['bx']) + \
                conv(h, params['wh'], params['bh'])
        i, f, g, o = jnp.split(gates, 4, axis=1)
        c = jax.nn.sigmoid(f) * c + jax.nn.sigmoid(i) * jnp.tanh(g)
        h = jax.nn.sigmoid(o) * jnp.tanh(c)
        ys.append(h)
    y = jnp.stack(ys, axis=1)
    if squeeze:
        y = y[:, 0]
    return y


if __name__ == "__main__":
    cell_info = {
        'cell': 'ConvLSTMCell', 'input_size': 4, 'output_size': 32,
        'kernel_size': 3, 'stride': 1, 'padding': 1, 'bias': True,
        'num_layers': 1, 'activation': 'tanh',
    }
    B, T, Cin, H, W = 2, 8, 4, 16, 16
    Cout = cell_info['output_size']

    key = jax.random.PRNGKey(0)
    k1, k2, k3, k4, k5 = jax.random.split(key, 5)
    x = jax.random.normal(k1, (B, T, Cin, H, W), dtype=jnp.float32)
    scale = 0.1
    params = {
        'wx': scale * jax.random.normal(k2, (4 * Cout, Cin, 3, 3), jnp.float32),
        'bx': scale * jax.random.normal(k3, (4 * Cout,), jnp.float32),
        'wh': scale * jax.random.normal(k4, (4 * Cout, Cout, 3, 3), jnp.float32),
        'bh': scale * jax.random.normal(k5, (4 * Cout,), jnp.float32),
    }

    y = jax.block_until_ready(cell_forward(params, x, cell_info))
    y_ref = cell_forward_ref(params, x, cell_info)

    assert y.shape == (B, T, Cout, H, W), y.shape
    assert jnp.allclose(y, y_ref, atol=5e-2, rtol=5e-2), \
        float(jnp.max(jnp.abs(y - y_ref)))
    print("KERNEL_OK")
</pallas_src>

<mosaic_0001>
module attributes {stable_mosaic.version = 11 : i64} {
  func.func @_convlstm_kernel(%arg0: i32, %arg1: memref<1x8x4x471xbf16, #tpu.memory_space<vmem>>, %arg2: memref<128x360xbf16, #tpu.memory_space<vmem>>, %arg3: memref<128x1xf32, #tpu.memory_space<vmem>>, %arg4: memref<1x324xf32, #tpu.memory_space<vmem>>, %arg5: memref<1x8x32x324xf32, #tpu.memory_space<vmem>>, %arg6: memref<40x471xbf16, #tpu.memory_space<vmem>>, %arg7: memref<360x324xbf16, #tpu.memory_space<vmem>>, %arg8: memref<32x324xf32, #tpu.memory_space<vmem>>) attributes {dimension_semantics = [#tpu.dimension_semantics<parallel>], iteration_bounds = array<i64: 2>, scalar_prefetch = 0 : i64, scratch_operands = 3 : i64, tpu.core_type = #tpu.core_type<tc>, window_params = [{transform_indices = @transform_0, window_bounds = array<i64: 1, 8, 4, 471>}, {pipeline_mode = #tpu.pipeline_mode<synchronous>, transform_indices = @transform_1, window_bounds = array<i64: 128, 360>}, {pipeline_mode = #tpu.pipeline_mode<synchronous>, transform_indices = @transform_2, window_bounds = array<i64: 128, 1>}, {pipeline_mode = #tpu.pipeline_mode<synchronous>, transform_indices = @transform_3, window_bounds = array<i64: 1, 324>}, {transform_indices = @transform_4, window_bounds = array<i64: 1, 8, 32, 324>}]} {
    %cst = arith.constant 0.000000e+00 : bf16
    %0 = vector.broadcast %cst : bf16 to vector<40x471xbf16>
    %c0 = arith.constant 0 : index
    %c0_0 = arith.constant 0 : index
    %1 = vector.load %arg6[%c0, %c0_0] : memref<40x471xbf16, #tpu.memory_space<vmem>>, vector<40x471xbf16>
    tpu.vector_store %arg6[%c0, %c0_0], %0 {strides = array<i32>} : memref<40x471xbf16, #tpu.memory_space<vmem>>, vector<40x471xbf16>,
    %cst_1 = arith.constant 0.000000e+00 : f32
    %2 = vector.broadcast %cst_1 : f32 to vector<32x324xf32>
    %c0_2 = arith.constant 0 : index
    %c0_3 = arith.constant 0 : index
    %3 = vector.load %arg8[%c0_2, %c0_3] : memref<32x324xf32, #tpu.memory_space<vmem>>, vector<32x324xf32>
    tpu.vector_store %arg8[%c0_2, %c0_3], %2 {strides = array<i32>} : memref<32x324xf32, #tpu.memory_space<vmem>>, vector<32x324xf32>,
    %c0_i32 = arith.constant 0 : i32
    %c8_i32 = arith.constant 8 : i32
    %4 = arith.addi %c0_i32, %c8_i32 : i32
    %c1_i32 = arith.constant 1 : i32
    scf.for %arg9 = %c0_i32 to %4 step %c1_i32  : i32 {
      %c0_5 = arith.constant 0 : index
      %5 = arith.index_cast %arg9 : i32 to index
      %c0_6 = arith.constant 0 : index
      %c0_7 = arith.constant 0 : index
      %6 = vector.load %arg1[%c0_5, %5, %c0_6, %c0_7] : memref<1x8x4x471xbf16, #tpu.memory_space<vmem>>, vector<1x1x4x471xbf16>
      %7 = vector.shape_cast %6 : vector<1x1x4x471xbf16> to vector<4x471xbf16>
      %c32 = arith.constant 32 : index
      %c0_8 = arith.constant 0 : index
      %8 = vector.load %arg6[%c32, %c0_8] : memref<40x471xbf16, #tpu.memory_space<vmem>>, vector<4x471xbf16>
      tpu.vector_store %arg6[%c32, %c0_8], %7 {strides = array<i32>} : memref<40x471xbf16, #tpu.memory_space<vmem>>, vector<4x471xbf16>,
      %c0_9 = arith.constant 0 : index
      %c109 = arith.constant 109 : index
      %9 = vector.load %arg6[%c0_9, %c109] : memref<40x471xbf16, #tpu.memory_space<vmem>>, vector<40x324xbf16>
      %c0_10 = arith.constant 0 : index
      %c0_11 = arith.constant 0 : index
      %10 = vector.load %arg7[%c0_10, %c0_11] : memref<360x324xbf16, #tpu.memory_space<vmem>>, vector<40x324xbf16>
      tpu.vector_store %arg7[%c0_10, %c0_11], %9 {strides = array<i32>} : memref<360x324xbf16, #tpu.memory_space<vmem>>, vector<40x324xbf16>,
      %c0_12 = arith.constant 0 : index
      %c110 = arith.constant 110 : index
      %11 = vector.load %arg6[%c0_12, %c110] : memref<40x471xbf16, #tpu.memory_space<vmem>>, vector<40x324xbf16>
      %c40 = arith.constant 40 : index
      %c0_13 = arith.constant 0 : index
      %12 = vector.load %arg7[%c40, %c0_13] : memref<360x324xbf16, #tpu.memory_space<vmem>>, vector<40x324xbf16>
      tpu.vector_store %arg7[%c40, %c0_13], %11 {strides = array<i32>} : memref<360x324xbf16, #tpu.memory_space<vmem>>, vector<40x324xbf16>,
      %c0_14 = arith.constant 0 : index
      %c111 = arith.constant 111 : index
      %13 = vector.load %arg6[%c0_14, %c111] : memref<40x471xbf16, #tpu.memory_space<vmem>>, vector<40x324xbf16>
      %c80 = arith.constant 80 : index
      %c0_15 = arith.constant 0 : index
      %14 = vector.load %arg7[%c80, %c0_15] : memref<360x324xbf16, #tpu.memory_space<vmem>>, vector<40x324xbf16>
      tpu.vector_store %arg7[%c80, %c0_15], %13 {strides = array<i32>} : memref<360x324xbf16, #tpu.memory_space<vmem>>, vector<40x324xbf16>,
      %c0_16 = arith.constant 0 : index
      %c127 = arith.constant 127 : index
      %15 = vector.load %arg6[%c0_16, %c127] : memref<40x471xbf16, #tpu.memory_space<vmem>>, vector<40x324xbf16>
      %c120 = arith.constant 120 : index
      %c0_17 = arith.constant 0 : index
      %16 = vector.load %arg7[%c120, %c0_17] : memref<360x324xbf16, #tpu.memory_space<vmem>>, vector<40x324xbf16>
      tpu.vector_store %arg7[%c120, %c0_17], %15 {strides = array<i32>} : memref<360x324xbf16, #tpu.memory_space<vmem>>, vector<40x324xbf16>,
      %c0_18 = arith.constant 0 : index
      %c128 = arith.constant 128 : index
      %17 = vector.load %arg6[%c0_18, %c128] : memref<40x471xbf16, #tpu.memory_space<vmem>>, vector<40x324xbf16>
      %c160 = arith.constant 160 : index
      %c0_19 = arith.constant 0 : index
      %18 = vector.load %arg7[%c160, %c0_19] : memref<360x324xbf16, #tpu.memory_space<vmem>>, vector<40x324xbf16>
      tpu.vector_store %arg7[%c160, %c0_19], %17 {strides = array<i32>} : memref<360x324xbf16, #tpu.memory_space<vmem>>, vector<40x324xbf16>,
      %c0_20 = arith.constant 0 : index
      %c129 = arith.constant 129 : index
      %19 = vector.load %arg6[%c0_20, %c129] : memref<40x471xbf16, #tpu.memory_space<vmem>>, vector<40x324xbf16>
      %c200 = arith.constant 200 : index
      %c0_21 = arith.constant 0 : index
      %20 = vector.load %arg7[%c200, %c0_21] : memref<360x324xbf16, #tpu.memory_space<vmem>>, vector<40x324xbf16>
      tpu.vector_store %arg7[%c200, %c0_21], %19 {strides = array<i32>} : memref<360x324xbf16, #tpu.memory_space<vmem>>, vector<40x324xbf16>,
      %c0_22 = arith.constant 0 : index
      %c145 = arith.constant 145 : index
      %21 = vector.load %arg6[%c0_22, %c145] : memref<40x471xbf16, #tpu.memory_space<vmem>>, vector<40x324xbf16>
      %c240 = arith.constant 240 : index
      %c0_23 = arith.constant 0 : index
      %22 = vector.load %arg7[%c240, %c0_23] : memref<360x324xbf16, #tpu.memory_space<vmem>>, vector<40x324xbf16>
      tpu.vector_store %arg7[%c240, %c0_23], %21 {strides = array<i32>} : memref<360x324xbf16, #tpu.memory_space<vmem>>, vector<40x324xbf16>,
      %c0_24 = arith.constant 0 : index
      %c146 = arith.constant 146 : index
      %23 = vector.load %arg6[%c0_24, %c146] : memref<40x471xbf16, #tpu.memory_space<vmem>>, vector<40x324xbf16>
      %c280 = arith.constant 280 : index
      %c0_25 = arith.constant 0 : index
      %24 = vector.load %arg7[%c280, %c0_25] : memref<360x324xbf16, #tpu.memory_space<vmem>>, vector<40x324xbf16>
      tpu.vector_store %arg7[%c280, %c0_25], %23 {strides = array<i32>} : memref<360x324xbf16, #tpu.memory_space<vmem>>, vector<40x324xbf16>,
      %c0_26 = arith.constant 0 : index
      %c147 = arith.constant 147 : index
      %25 = vector.load %arg6[%c0_26, %c147] : memref<40x471xbf16, #tpu.memory_space<vmem>>, vector<40x324xbf16>
      %c320 = arith.constant 320 : index
      %c0_27 = arith.constant 0 : index
      %26 = vector.load %arg7[%c320, %c0_27] : memref<360x324xbf16, #tpu.memory_space<vmem>>, vector<40x324xbf16>
      tpu.vector_store %arg7[%c320, %c0_27], %25 {strides = array<i32>} : memref<360x324xbf16, #tpu.memory_space<vmem>>, vector<40x324xbf16>,
      %c0_28 = arith.constant 0 : index
      %c0_29 = arith.constant 0 : index
      %27 = vector.load %arg2[%c0_28, %c0_29] : memref<128x360xbf16, #tpu.memory_space<vmem>>, vector<128x360xbf16>
      %c0_30 = arith.constant 0 : index
      %c0_31 = arith.constant 0 : index
      %28 = vector.load %arg7[%c0_30, %c0_31] : memref<360x324xbf16, #tpu.memory_space<vmem>>, vector<360x324xbf16>
      %cst_32 = arith.constant dense<0.000000e+00> : vector<128x324xf32>
      %29 = tpu.matmul %27, %28, %cst_32 {dimension_numbers = #tpu.dot_dimension_numbers<[1], [0], [0], [1], [0, 0, 1, 1], [], []>} : vector<128x360xbf16>, vector<360x324xbf16>, vector<128x324xf32> -> vector<128x324xf32>
      %c0_33 = arith.constant 0 : index
      %c0_34 = arith.constant 0 : index
      %30 = vector.load %arg3[%c0_33, %c0_34] : memref<128x1xf32, #tpu.memory_space<vmem>>, vector<128x1xf32>
      %31 = vector.broadcast %30 : vector<128x1xf32> to vector<128x324xf32>
      %32 = arith.addf %29, %31 : vector<128x324xf32>
      %33 = vector.extract_strided_slice %32 {offsets = [0, 0], sizes = [32, 324], strides = [1, 1]} : vector<128x324xf32> to vector<32x324xf32>
      %cst_35 = arith.constant 5.000000e-01 : f32
      %34 = vector.broadcast %cst_35 : f32 to vector<32x324xf32>
      %35 = arith.mulf %34, %33 : vector<32x324xf32>
      %36 = math.tanh %35 : vector<32x324xf32>
      %cst_36 = arith.constant 5.000000e-01 : f32
      %37 = vector.broadcast %cst_36 : f32 to vector<32x324xf32>
      %38 = arith.mulf %37, %36 : vector<32x324xf32>
      %cst_37 = arith.constant 5.000000e-01 : f32
      %39 = vector.broadcast %cst_37 : f32 to vector<32x324xf32>
      %40 = arith.addf %38, %39 : vector<32x324xf32>
      %41 = vector.extract_strided_slice %32 {offsets = [32, 0], sizes = [32, 324], strides = [1, 1]} : vector<128x324xf32> to vector<32x324xf32>
      %cst_38 = arith.constant 5.000000e-01 : f32
      %42 = vector.broadcast %cst_38 : f32 to vector<32x324xf32>
      %43 = arith.mulf %42, %41 : vector<32x324xf32>
      %44 = math.tanh %43 : vector<32x324xf32>
      %cst_39 = arith.constant 5.000000e-01 : f32
      %45 = vector.broadcast %cst_39 : f32 to vector<32x324xf32>
      %46 = arith.mulf %45, %44 : vector<32x324xf32>
      %cst_40 = arith.constant 5.000000e-01 : f32
      %47 = vector.broadcast %cst_40 : f32 to vector<32x324xf32>
      %48 = arith.addf %46, %47 : vector<32x324xf32>
      %49 = vector.extract_strided_slice %32 {offsets = [64, 0], sizes = [32, 324], strides = [1, 1]} : vector<128x324xf32> to vector<32x324xf32>
      %50 = math.tanh %49 : vector<32x324xf32>
      %51 = vector.extract_strided_slice %32 {offsets = [96, 0], sizes = [32, 324], strides = [1, 1]} : vector<128x324xf32> to vector<32x324xf32>
      %cst_41 = arith.constant 5.000000e-01 : f32
      %52 = vector.broadcast %cst_41 : f32 to vector<32x324xf32>
      %53 = arith.mulf %52, %51 : vector<32x324xf32>
      %54 = math.tanh %53 : vector<32x324xf32>
      %cst_42 = arith.constant 5.000000e-01 : f32
      %55 = vector.broadcast %cst_42 : f32 to vector<32x324xf32>
      %56 = arith.mulf %55, %54 : vector<32x324xf32>
      %cst_43 = arith.constant 5.000000e-01 : f32
      %57 = vector.broadcast %cst_43 : f32 to vector<32x324xf32>
      %58 = arith.addf %56, %57 : vector<32x324xf32>
      %c0_44 = arith.constant 0 : index
      %c0_45 = arith.constant 0 : index
      %59 = vector.load %arg8[%c0_44, %c0_45] : memref<32x324xf32, #tpu.memory_space<vmem>>, vector<32x324xf32>
      %60 = arith.mulf %48, %59 : vector<32x324xf32>
      %61 = arith.mulf %40, %50 : vector<32x324xf32>
      %62 = arith.addf %60, %61 : vector<32x324xf32>
      %c0_46 = arith.constant 0 : index
      %c0_47 = arith.constant 0 : index
      %63 = vector.load %arg4[%c0_46, %c0_47] : memref<1x324xf32, #tpu.memory_space<vmem>>, vector<1x324xf32>
      %64 = vector.broadcast %63 : vector<1x324xf32> to vector<32x324xf32>
      %65 = arith.mulf %62, %64 : vector<32x324xf32>
      %66 = math.tanh %65 : vector<32x324xf32>
      %67 = arith.mulf %58, %66 : vector<32x324xf32>
      %c0_48 = arith.constant 0 : index
      %c0_49 = arith.constant 0 : index
      %68 = vector.load %arg8[%c0_48, %c0_49] : memref<32x324xf32, #tpu.memory_space<vmem>>, vector<32x324xf32>
      tpu.vector_store %arg8[%c0_48, %c0_49], %65 {strides = array<i32>} : memref<32x324xf32, #tpu.memory_space<vmem>>, vector<32x324xf32>,
      %c0_50 = arith.constant 0 : index
      %69 = arith.index_cast %arg9 : i32 to index
      %c0_51 = arith.constant 0 : index
      %c0_52 = arith.constant 0 : index
      %70 = vector.load %arg5[%c0_50, %69, %c0_51, %c0_52] : memref<1x8x32x324xf32, #tpu.memory_space<vmem>>, vector<1x1x32x324xf32>
      %71 = vector.shape_cast %70 : vector<1x1x32x324xf32> to vector<32x324xf32>
      %72 = vector.shape_cast %67 : vector<32x324xf32> to vector<1x1x32x324xf32>
      tpu.vector_store %arg5[%c0_50, %69, %c0_51, %c0_52], %72 {strides = array<i32>} : memref<1x8x32x324xf32, #tpu.memory_space<vmem>>, vector<1x1x32x324xf32>,
      %73 = arith.truncf %67 : vector<32x324xf32> to vector<32x324xbf16>
      %c0_53 = arith.constant 0 : index
      %c128_54 = arith.constant 128 : index
      %74 = vector.load %arg6[%c0_53, %c128_54] : memref<40x471xbf16, #tpu.memory_space<vmem>>, vector<32x324xbf16>
      tpu.vector_store %arg6[%c0_53, %c128_54], %73 {strides = array<i32>} : memref<40x471xbf16, #tpu.memory_space<vmem>>, vector<32x324xbf16>,
    }
    %c8_i32_4 = arith.constant 8 : i32
    return
  }
  func.func @transform_0(%arg0: i32) -> (i32, i32, i32, i32) {
    %c0_i32 = arith.constant 0 : i32
    %c0_i32_0 = arith.constant 0 : i32
    %c0_i32_1 = arith.constant 0 : i32
    %c0_i32_2 = arith.constant 0 : i32
    return %arg0, %c0_i32, %c0_i32_0, %c0_i32_1 : i32, i32, i32, i32
  }
  func.func @transform_1(%arg0: i32) -> (i32, i32) {
    %c0_i32 = arith.constant 0 : i32
    %c0_i32_0 = arith.constant 0 : i32
    %c0_i32_1 = arith.constant 0 : i32
    return %c0_i32, %c0_i32_0 : i32, i32
  }
  func.func @transform_2(%arg0: i32) -> (i32, i32) {
    %c0_i32 = arith.constant 0 : i32
    %c0_i32_0 = arith.constant 0 : i32
    %c0_i32_1 = arith.constant 0 : i32
    return %c0_i32, %c0_i32_0 : i32, i32
  }
  func.func @transform_3(%arg0: i32) -> (i32, i32) {
    %c0_i32 = arith.constant 0 : i32
    %c0_i32_0 = arith.constant 0 : i32
    %c0_i32_1 = arith.constant 0 : i32
    return %c0_i32, %c0_i32_0 : i32, i32
  }
  func.func @transform_4(%arg0: i32) -> (i32, i32, i32, i32) {
    %c0_i32 = arith.constant 0 : i32
    %c0_i32_0 = arith.constant 0 : i32
    %c0_i32_1 = arith.constant 0 : i32
    %c0_i32_2 = arith.constant 0 : i32
    return %arg0, %c0_i32, %c0_i32_0, %c0_i32_1 : i32, i32, i32, i32
  }
}

</mosaic_0001>

<llo_original>
// kernel: tpu_custom_call.1
$region0: #{tpu_custom_call.1}
  #allocation0 [shape = 'u32[]', space=smem, size = 0x4, offset = 0x4, fixed_abs, tag = 'smem constant byte address 0x4 - core index']
  #allocation1 [shape = 'u32[144,128]{1,0:T(1,128)}', space=vmem, size = 0x12000, scoped, tag = 'internal scratch']
  #allocation2 [shape = 'bf16[40,471]{1,0:T(8,128)(2,1)}', space=vmem, size = 0xa000, scoped, tag = 'scratch operand']
  #allocation3 [shape = 'bf16[360,324]{1,0:T(8,128)(2,1)}', space=vmem, size = 0x43800, scoped, tag = 'scratch operand']
  #allocation4 [shape = 'f32[32,324]{1,0:T(8,128)}', space=vmem, size = 0xc000, scoped, tag = 'scratch operand']
  %s0 = inlined_call_operand.vmem [shape: bf16[2,8,4,471], index: 0, kind: input, shape index: {}]
  %s1 = inlined_call_operand.vmem [shape: bf16[128,360], index: 1, kind: input, shape index: {}]
  %s2 = inlined_call_operand.vmem [shape: f32[128,1], index: 2, kind: input, shape index: {}]
  %s3 = inlined_call_operand.vmem [shape: f32[1,324], index: 3, kind: input, shape index: {}]
  %s4 = inlined_call_operand.hbm [shape: f32[2,8,32,324], index: 4, kind: output, shape index: {}]
  %s5 = sld [smem:[#allocation0]]
  $region56: #{tpu_custom_call.1} parent=0
    _
  %s7 = ssub.s32 1, %s5
  %s8 = scalar_select 0, %s7, %s5
  $region1: #{tpu_custom_call.1} parent=0
    #allocation5 [shape = 'u8[786432]{0}', space=vmem, size = 0xc0000, scoped, tag = 'output window, operand 0']
    #allocation6 [shape = 's32[2]{0}', space=sflag, size = 0x8, scoped, tag = 'scoped memory for tpu_custom_call.1']
    %9 = vsyncpa [#allocation6], 0
    %s10 = scalar_lea.sflag [#allocation6], 1
    %11 = vsyncpa %s10, 0
    loop: start=0, step=1, limit=4
    $region2: #{tpu_custom_call.1} parent=1 // loop_pre_header
      _
    $region3: #{tpu_custom_call.1} parent=1 // loop_header
      %s13 = sphi 0, %s17
      %p14 = scmp.ge.s32.totalorder %s13, 4
      %s23 = sphi 0, %s25
      %s26 = sphi 0, %s23
      %s27 = sphi 0, %s26
      %s43 = sphi 0, %s27
      %s47 = sphi 0, %s47
      %s49 = sphi 0, %s47
      %s50 = sphi 0, %s49
      %s64 = sphi 0, %s50
      %s68 = sphi 0, %s68
      %s70 = sphi 0, %s68
      %s71 = sphi 0, %s70
      %s85 = sphi 0, %s71
      %s89 = sphi 0, %s89
      %s91 = sphi 0, %s89
      %s92 = sphi 0, %s91
      %s106 = sphi 0, %s92
      %s112 = sphi 0, %s114
      %s115 = sphi 0, %s112
      %s116 = sphi 0, %s115
      %s132 = sphi 0, %s116
    $region4: #{tpu_custom_call.1} parent=1 // loop_header_branch
      %16 = sbr.rel (%p14) target = $region8
    $region5: #{tpu_custom_call.1} parent=1 // loop_body
      %s18 = ssub.s32 %s13, 1
      %s19 = ssub.s32 %s13, 2
      %s20 = sadd.s32 %s13, 1
      %s21 = ssub.s32 %s13, %s20
      %p22 = scmp.eq.s32.totalorder %s21, 0
      %s24 = sadd.s32 %s23, 1
      %s25 = scalar_select %p22, %s23, %s24
      %p28 = pneg %p22
      %p29 = scmp.eq.s32.totalorder %s13, 1
      %p30 = por %p28, %p29
      %p31 = scmp.ne.s32.totalorder %s23, %s26
      %p32 = scmp.eq.s32.totalorder %s13, 0
      %p33 = por %p31, %p32
      %p34 = scmp.ne.s32.totalorder %s23, %s26
      %p35 = scmp.eq.s32.totalorder %s18, 1
      %p36 = por %p34, %p35
      %p37 = scmp.ne.s32.totalorder %s26, %s27
      %p38 = scmp.eq.s32.totalorder %s18, 0
      %p39 = por %p37, %p38
      %p40 = scmp.ne.s32.totalorder %s26, %s27
      %p41 = scmp.eq.s32.totalorder %s19, 1
      %p42 = por %p40, %p41
      %p44 = scmp.ne.s32.totalorder %s27, %s43
      %p45 = scmp.eq.s32.totalorder %s19, 0
      %p46 = por %p44, %p45
      %s48 = sadd.s32 %s47, 1
      %p51 = scmp.eq.s32.totalorder %s13, 1
      %p52 = scmp.ne.s32.totalorder %s47, %s49
      %p53 = scmp.eq.s32.totalorder %s13, 0
      %p54 = por %p52, %p53
      %p55 = scmp.ne.s32.totalorder %s47, %s49
      %p56 = scmp.eq.s32.totalorder %s18, 1
      %p57 = por %p55, %p56
      %p58 = scmp.ne.s32.totalorder %s49, %s50
      %p59 = scmp.eq.s32.totalorder %s18, 0
      %p60 = por %p58, %p59
      %p61 = scmp.ne.s32.totalorder %s49, %s50
      %p62 = scmp.eq.s32.totalorder %s19, 1
      %p63 = por %p61, %p62
      %p65 = scmp.ne.s32.totalorder %s50, %s64
      %p66 = scmp.eq.s32.totalorder %s19, 0
      %p67 = por %p65, %p66
      %s69 = sadd.s32 %s68, 1
      %p72 = scmp.eq.s32.totalorder %s13, 1
      %p73 = scmp.ne.s32.totalorder %s68, %s70
      %p74 = scmp.eq.s32.totalorder %s13, 0
      %p75 = por %p73, %p74
      %p76 = scmp.ne.s32.totalorder %s68, %s70
      %p77 = scmp.eq.s32.totalorder %s18, 1
      %p78 = por %p76, %p77
      %p79 = scmp.ne.s32.totalorder %s70, %s71
      %p80 = scmp.eq.s32.totalorder %s18, 0
      %p81 = por %p79, %p80
      %p82 = scmp.ne.s32.totalorder %s70, %s71
      %p83 = scmp.eq.s32.totalorder %s19, 1
      %p84 = por %p82, %p83
      %p86 = scmp.ne.s32.totalorder %s71, %s85
      %p87 = scmp.eq.s32.totalorder %s19, 0
      %p88 = por %p86, %p87
      %s90 = sadd.s32 %s89, 1
      %p93 = scmp.eq.s32.totalorder %s13, 1
      %p94 = scmp.ne.s32.totalorder %s89, %s91
      %p95 = scmp.eq.s32.totalorder %s13, 0
      %p96 = por %p94, %p95
      %p97 = scmp.ne.s32.totalorder %s89, %s91
      %p98 = scmp.eq.s32.totalorder %s18, 1
      %p99 = por %p97, %p98
      %p100 = scmp.ne.s32.totalorder %s91, %s92
      %p101 = scmp.eq.s32.totalorder %s18, 0
      %p102 = por %p100, %p101
      %p103 = scmp.ne.s32.totalorder %s91, %s92
      %p104 = scmp.eq.s32.totalorder %s19, 1
      %p105 = por %p103, %p104
      %p107 = scmp.ne.s32.totalorder %s92, %s106
      %p108 = scmp.eq.s32.totalorder %s19, 0
      %p109 = por %p107, %p108
      %s110 = ssub.s32 %s13, %s20
      %p111 = scmp.eq.s32.totalorder %s110, 0
      %s113 = sadd.s32 %s112, 1
      %s114 = scalar_select %p111, %s112, %s113
      %p117 = pneg %p111
      %p118 = scmp.eq.s32.totalorder %s13, 1
      %p119 = por %p117, %p118
      %p120 = scmp.ne.s32.totalorder %s112, %s115
      %p121 = scmp.eq.s32.totalorder %s13, 0
      %p122 = por %p120, %p121
      %p123 = scmp.ne.s32.totalorder %s112, %s115
      %p124 = scmp.eq.s32.totalorder %s18, 1
      %p125 = por %p123, %p124
      %p126 = scmp.ne.s32.totalorder %s115, %s116
      %p127 = scmp.eq.s32.totalorder %s18, 0
      %p128 = por %p126, %p127
      %p129 = scmp.ne.s32.totalorder %s115, %s116
      %p130 = scmp.eq.s32.totalorder %s19, 1
      %p131 = por %p129, %p130
      %p133 = scmp.ne.s32.totalorder %s116, %s132
      %p134 = scmp.eq.s32.totalorder %s19, 0
      %p135 = por %p133, %p134
      %p136 = scmp.le.s32.totalorder 1, %s13
      %p137 = scmp.lt.s32.totalorder %s13, 3
      %p138 = pnand %p136, %p137
      %p139 = pneg %p138
      // Predicated region
      $region9: #{tpu_custom_call.1} parent=5 // pred_check
        _
      $region10: #{tpu_custom_call.1} parent=5 // pred_check_branch
        %141 = sbr.rel (%p138) target = $region12
      $region11: #{tpu_custom_call.1} parent=5 // pred_region
        %s142 = ssub.s32 %s13, 1
        // Predicated region
        $region13: #{tpu_custom_call.1} parent=11 // pred_check
          %p143 = pneg %p60
        $region14: #{tpu_custom_call.1} parent=11 // pred_check_branch
          %145 = sbr.rel (%p143) target = $region16
        $region15: #{tpu_custom_call.1} parent=11 // pred_region
          _
        $region16: #{tpu_custom_call.1} parent=11 // pred_fallthru
          _
        // Predicated region
        $region17: #{tpu_custom_call.1} parent=11 // pred_check
          %p146 = pneg %p81
        $region18: #{tpu_custom_call.1} parent=11 // pred_check_branch
          %148 = sbr.rel (%p146) target = $region20
        $region19: #{tpu_custom_call.1} parent=11 // pred_region
          _
        $region20: #{tpu_custom_call.1} parent=11 // pred_fallthru
          _
        // Predicated region
        $region21: #{tpu_custom_call.1} parent=11 // pred_check
          %p149 = pneg %p102
        $region22: #{tpu_custom_call.1} parent=11 // pred_check_branch
          %151 = sbr.rel (%p149) target = $region24
        $region23: #{tpu_custom_call.1} parent=11 // pred_region
          _
        $region24: #{tpu_custom_call.1} parent=11 // pred_fallthru
          _
      $region12: #{tpu_custom_call.1} parent=5 // pred_fallthru
        _
      %p152 = scmp.lt.s32.totalorder %s13, 2
      // Predicated region
      $region25: #{tpu_custom_call.1} parent=5 // pred_check
        %p153 = pneg %p152
      $region26: #{tpu_custom_call.1} parent=5 // pred_check_branch
        %155 = sbr.rel (%p153) target = $region28
      $region27: #{tpu_custom_call.1} parent=5 // pred_region
        // Predicated region
        $region29: #{tpu_custom_call.1} parent=27 // pred_check
          %p156 = pneg %p33
        $region30: #{tpu_custom_call.1} parent=27 // pred_check_branch
          %158 = sbr.rel (%p156) target = $region32
        $region31: #{tpu_custom_call.1} parent=27 // pred_region
          %p159 = scmp.lt.s32.totalorder %s13, 1
          %s160 = scalar_select %p159, %s13, 1
          %s161 = smul.addr %s160, 32
          %s162 = smul.addr %s161, 2
          %s163 = scalar_lea.vmem %s0, %s162
        $region32: #{tpu_custom_call.1} parent=27 // pred_fallthru
          _
      $region28: #{tpu_custom_call.1} parent=5 // pred_fallthru
        _
      %p164 = scmp.le.s32.totalorder 1, %s13
      %p165 = scmp.lt.s32.totalorder %s13, 3
      %p166 = pnand %p164, %p165
      %p167 = pneg %p166
      // Predicated region
      $region33: #{tpu_custom_call.1} parent=5 // pred_check
        _
      $region34: #{tpu_custom_call.1} parent=5 // pred_check_branch
        %169 = sbr.rel (%p166) target = $region36
      $region35: #{tpu_custom_call.1} parent=5 // pred_region
        %s170 = ssub.s32 %s13, 1
        %p171 = scmp.lt.s32.totalorder %s18, 1
        %s172 = scalar_select %p171, %s18, 1
        %s173 = smul.addr %s172, 32
        %s174 = smul.addr %s173, 2
        %s175 = scalar_lea.vmem %s0, %s174
        %p176 = pneg %p39
        %p177 = pneg %p36
        %p178 = pneg %p60
        %p179 = pneg %p57
        %p180 = pneg %p81
        %p181 = pneg %p78
        %p182 = pneg %p102
        %p183 = pneg %p99
        %p184 = pneg %p128
        %p185 = pneg %p125
        %s186 = sand.u32 %s115, 1
        %s187 = scalar_lea.sflag [#allocation6], %s186
        %s188 = sand.u32 %s115, 1
        %s189 = smul.addr %s188, 768
        %s190 = scalar_lea.vmem [#allocation5], %s189
        %p191 = scmp.lt.s32.totalorder %s18, 1
        %s192 = scalar_select %p191, %s18, 1
        %s193 = smul.addr %s192, 32
        %s194 = smul.addr %s193, 2
        %s195 = scalar_lea.vmem %s0, %s194
        %197 = vst [vmem:[#allocation2] sm:$0xff] 0
        %vm198 = vcmask 1043456
        %vm199 = vcmask 711684
        %vm200 = vmor %vm199, %vm198
        %201 = vst.msk [vmem:[#allocation2 + $0x8] sm:$0xff] %vm200, 0
        %202 = vst [vmem:[#allocation2 + $0x10] sm:$0xff] 0
        %203 = vst.msk [vmem:[#allocation2 + $0x18] sm:$0xff] %vm200, 0
        %204 = vst [vmem:[#allocation2 + $0x20] sm:$0xff] 0
        %205 = vst.msk [vmem:[#allocation2 + $0x28] sm:$0xff] %vm200, 0
        %206 = vst [vmem:[#allocation2 + $0x30] sm:$0xff] 0
        %207 = vst.msk [vmem:[#allocation2 + $0x38] sm:$0xff] %vm200, 0
        %208 = vst [vmem:[#allocation2 + $0x40] sm:$0xff] 0
        %209 = vst.msk [vmem:[#allocation2 + $0x48] sm:$0xff] %vm200, 0
        %210 = vst [vmem:[#allocation4] sm:$0xff] 0.0
        %211 = vst [vmem:[#allocation4 + $0x8] sm:$0xff] 0.0
        %vm212 = vcmask 556032
        %213 = vst.msk [vmem:[#allocation4 + $0x10] sm:$0xff] %vm212, 0.0
        %214 = vst [vmem:[#allocation4 + $0x18] sm:$0xff] 0.0
        %215 = vst [vmem:[#allocation4 + $0x20] sm:$0xff] 0.0
        %216 = vst.msk [vmem:[#allocation4 + $0x28] sm:$0xff] %vm212, 0.0
        %217 = vst [vmem:[#allocation4 + $0x30] sm:$0xff] 0.0
        %218 = vst [vmem:[#allocation4 + $0x38] sm:$0xff] 0.0
        %219 = vst.msk [vmem:[#allocation4 + $0x40] sm:$0xff] %vm212, 0.0
        %220 = vst [vmem:[#allocation4 + $0x48] sm:$0xff] 0.0
        %221 = vst [vmem:[#allocation4 + $0x50] sm:$0xff] 0.0
        %222 = vst.msk [vmem:[#allocation4 + $0x58] sm:$0xff] %vm212, 0.0
        loop: start=0, step=1, limit=8
        $region37: #{tpu_custom_call.1} parent=35 // loop_pre_header
          _
        $region38: #{tpu_custom_call.1} parent=35 // loop_header
          %s224 = sphi 0, %s228
          %p225 = scmp.ge.s32.totalorder %s224, 8
        $region39: #{tpu_custom_call.1} parent=35 // loop_header_branch
          %227 = sbr.rel (%p225) target = $region43
        $region40: #{tpu_custom_call.1} parent=35 // loop_body
          %s229 = smul.u32 %s224, 4
          %s230 = smul.addr %s229, 2
          %s231 = scalar_lea.vmem %s195, %s230
          %v232 = vld [vmem:[%s231] sm:$0xff]
          %v234 = vcombine.high %v232, %v232
          %v236 = vunpack.c.l.s4 1983009808
          %v237 = vunpack.c.0.s8 %v236
          %v238 = vlaneseq
          %v239 = vshrl.u32 %v238, 7
          %v240 = vsub.s32 %v237, %v239
          %v241 = vrot.slane %v232, %v240
          %v243 = vunpack.c.l.s4 1983009808
          %v244 = vunpack.c.0.s8 %v243
          %v245 = vlaneseq
          %v246 = vshrl.u32 %v245, 7
          %v247 = vsub.s32 %v244, %v246
          %v248 = vrot.slane %v234, %v247
          %251 = vst [vmem:[#allocation2 + $0x40] sm:$0x33] %v241
          %vm252 = vcmask 1041408
          %vm253 = vcmask 709636
          %vm254 = vmor %vm253, %vm252
          %255 = vst.msk [vmem:[#allocation2 + $0x48] sm:$0x33] %vm254, %v248
          %v256 = vld [vmem:[#allocation2] sm:$0xff]
          %v257 = vld [vmem:[#allocation2 + $0x8] sm:$0xff]
          %v258 = vld [vmem:[#allocation2 + $0x10] sm:$0xff]
          %v259 = vld [vmem:[#allocation2 + $0x18] sm:$0xff]
          %v260 = vld [vmem:[#allocation2 + $0x20] sm:$0xff]
          %v261 = vld [vmem:[#allocation2 + $0x28] sm:$0xff]
          %v262 = vld [vmem:[#allocation2 + $0x30] sm:$0xff]
          %v263 = vld [vmem:[#allocation2 + $0x38] sm:$0xff]
          %v264 = vld [vmem:[#allocation2 + $0x40] sm:$0xff]
          %v265 = vld [vmem:[#allocation2 + $0x48] sm:$0xff]
          %276 = vrot.lane.b32.xlu0 %v256, 19
          %v277 = vpop.permute.xlu0 %276
          %278 = vrot.lane.b32.xlu0 %v257, 19
          %v279 = vpop.permute.xlu0 %278
          %280 = vrot.lane.b32.xlu0 %v258, 19
          %v281 = vpop.permute.xlu0 %280
          %282 = vrot.lane.b32.xlu0 %v259, 19
          %v283 = vpop.permute.xlu0 %282
          %284 = vrot.lane.b32.xlu0 %v260, 19
          %v285 = vpop.permute.xlu0 %284
          %286 = vrot.lane.b32.xlu0 %v261, 19
          %v287 = vpop.permute.xlu0 %286
          %288 = vrot.lane.b32.xlu0 %v262, 19
          %v289 = vpop.permute.xlu0 %288
          %290 = vrot.lane.b32.xlu0 %v263, 19
          %v291 = vpop.permute.xlu0 %290
          %292 = vrot.lane.b32.xlu0 %v264, 19
          %v293 = vpop.permute.xlu0 %292
          %294 = vrot.lane.b32.xlu0 %v265, 19
          %v295 = vpop.permute.xlu0 %294
          %v296 = vrot.slane %v277, 4
          %v297 = vrot.slane %v279, 4
          %v298 = vrot.slane %v281, 4
          %v299 = vrot.slane %v283, 4
          %v300 = vrot.slane %v285, 4
          %v301 = vrot.slane %v287, 4
          %v302 = vrot.slane %v289, 4
          %v303 = vrot.slane %v291, 4
          %v304 = vrot.slane %v293, 4
          %v305 = vrot.slane %v295, 4
          %vm306 = vcmask 1043456
          %v307 = vsel %vm306, %v296, %v297
          %vm308 = vcmask 154624
          %v309 = vsel %vm308, %v277, %v307
          %v310 = vsel %vm308, %v279, %v297
          %v311 = vsel %vm306, %v298, %v299
          %v312 = vsel %vm308, %v281, %v311
          %v313 = vsel %vm308, %v283, %v299
          %v314 = vsel %vm306, %v300, %v301
          %v315 = vsel %vm308, %v285, %v314
          %v316 = vsel %vm308, %v287, %v301
          %v317 = vsel %vm306, %v302, %v303
          %v318 = vsel %vm308, %v289, %v317
          %v319 = vsel %vm308, %v291, %v303
          %v320 = vsel %vm306, %v304, %v305
          %v321 = vsel %vm308, %v293, %v320
          %v322 = vsel %vm308, %v295, %v305
          %333 = vst [vmem:[#allocation3] sm:$0xff] %v309
          %vm334 = vcmask 551936
          %335 = vst.msk [vmem:[#allocation3 + $0x8] sm:$0xf] %vm334, %v310
          %336 = vst [vmem:[#allocation3 + $0xc] sm:$0xff] %v312
          %337 = vst.msk [vmem:[#allocation3 + $0x14] sm:$0xf] %vm334, %v313
          %338 = vst [vmem:[#allocation3 + $0x18] sm:$0xff] %v315
          %339 = vst.msk [vmem:[#allocation3 + $0x20] sm:$0xf] %vm334, %v316
          %340 = vst [vmem:[#allocation3 + $0x24] sm:$0xff] %v318
          %341 = vst.msk [vmem:[#allocation3 + $0x2c] sm:$0xf] %vm334, %v319
          %342 = vst [vmem:[#allocation3 + $0x30] sm:$0xff] %v321
          %343 = vst.msk [vmem:[#allocation3 + $0x38] sm:$0xf] %vm334, %v322
          %v344 = vld [vmem:[#allocation2] sm:$0xff]
          %v345 = vld [vmem:[#allocation2 + $0x8] sm:$0xff]
          %v346 = vld [vmem:[#allocation2 + $0x10] sm:$0xff]
          %v347 = vld [vmem:[#allocation2 + $0x18] sm:$0xff]
          %v348 = vld [vmem:[#allocation2 + $0x20] sm:$0xff]
          %v349 = vld [vmem:[#allocation2 + $0x28] sm:$0xff]
          %v350 = vld [vmem:[#allocation2 + $0x30] sm:$0xff]
          %v351 = vld [vmem:[#allocation2 + $0x38] sm:$0xff]
          %v352 = vld [vmem:[#allocation2 + $0x40] sm:$0xff]
          %v353 = vld [vmem:[#allocation2 + $0x48] sm:$0xff]
          %364 = vrot.lane.b32.xlu0 %v344, 18
          %v365 = vpop.permute.xlu0 %364
          %366 = vrot.lane.b32.xlu0 %v345, 18
          %v367 = vpop.permute.xlu0 %366
          %368 = vrot.lane.b32.xlu0 %v346, 18
          %v369 = vpop.permute.xlu0 %368
          %370 = vrot.lane.b32.xlu0 %v347, 18
          %v371 = vpop.permute.xlu0 %370
          %372 = vrot.lane.b32.xlu0 %v348, 18
          %v373 = vpop.permute.xlu0 %372
          %374 = vrot.lane.b32.xlu0 %v349, 18
          %v375 = vpop.permute.xlu0 %374
          %376 = vrot.lane.b32.xlu0 %v350, 18
          %v377 = vpop.permute.xlu0 %376
          %378 = vrot.lane.b32.xlu0 %v351, 18
          %v379 = vpop.permute.xlu0 %378
          %380 = vrot.lane.b32.xlu0 %v352, 18
          %v381 = vpop.permute.xlu0 %380
          %382 = vrot.lane.b32.xlu0 %v353, 18
          %v383 = vpop.permute.xlu0 %382
          %v384 = vrot.slane %v365, 4
          %v385 = vrot.slane %v367, 4
          %v386 = vrot.slane %v369, 4
          %v387 = vrot.slane %v371, 4
          %v388 = vrot.slane %v373, 4
          %v389 = vrot.slane %v375, 4
          %v390 = vrot.slane %v377, 4
          %v391 = vrot.slane %v379, 4
          %v392 = vrot.slane %v381, 4
          %v393 = vrot.slane %v383, 4
          %v394 = vsel %vm306, %v384, %v385
          %vm395 = vcmask 146432
          %v396 = vsel %vm395, %v365, %v394
          %v397 = vsel %vm395, %v367, %v385
          %v398 = vsel %vm306, %v386, %v387
          %v399 = vsel %vm395, %v369, %v398
          %v400 = vsel %vm395, %v371, %v387
          %v401 = vsel %vm306, %v388, %v389
          %v402 = vsel %vm395, %v373, %v401
          %v403 = vsel %vm395, %v375, %v389
          %v404 = vsel %vm306, %v390, %v391
          %v405 = vsel %vm395, %v377, %v404
          %v406 = vsel %vm395, %v379, %v391
          %v407 = vsel %vm306, %v392, %v393
          %v408 = vsel %vm395, %v381, %v407
          %v409 = vsel %vm395, %v383, %v393
          %420 = vst [vmem:[#allocation3 + $0x3c] sm:$0xff] %v396
          %421 = vst.msk [vmem:[#allocation3 + $0x44] sm:$0xf] %vm334, %v397
          %422 = vst [vmem:[#allocation3 + $0x48] sm:$0xff] %v399
          %423 = vst.msk [vmem:[#allocation3 + $0x50] sm:$0xf] %vm334, %v400
          %424 = vst [vmem:[#allocation3 + $0x54] sm:$0xff] %v402
          %425 = vst.msk [vmem:[#allocation3 + $0x5c] sm:$0xf] %vm334, %v403
          %426 = vst [vmem:[#allocation3 + $0x60] sm:$0xff] %v405
          %427 = vst.msk [vmem:[#allocation3 + $0x68] sm:$0xf] %vm334, %v406
          %428 = vst [vmem:[#allocation3 + $0x6c] sm:$0xff] %v408
          %429 = vst.msk [vmem:[#allocation3 + $0x74] sm:$0xf] %vm334, %v409
          %v430 = vld [vmem:[#allocation2] sm:$0xff]
          %v431 = vld [vmem:[#allocation2 + $0x8] sm:$0xff]
          %v432 = vld [vmem:[#allocation2 + $0x10] sm:$0xff]
          %v433 = vld [vmem:[#allocation2 + $0x18] sm:$0xff]
          %v434 = vld [vmem:[#allocation2 + $0x20] sm:$0xff]
          %v435 = vld [vmem:[#allocation2 + $0x28] sm:$0xff]
          %v436 = vld [vmem:[#allocation2 + $0x30] sm:$0xff]
          %v437 = vld [vmem:[#allocation2 + $0x38] sm:$0xff]
          %v438 = vld [vmem:[#allocation2 + $0x40] sm:$0xff]
          %v439 = vld [vmem:[#allocation2 + $0x48] sm:$0xff]
          %450 = vrot.lane.b32.xlu0 %v430, 17
          %v451 = vpop.permute.xlu0 %450
          %452 = vrot.lane.b32.xlu0 %v431, 17
          %v453 = vpop.permute.xlu0 %452
          %454 = vrot.lane.b32.xlu0 %v432, 17
          %v455 = vpop.permute.xlu0 %454
          %456 = vrot.lane.b32.xlu0 %v433, 17
          %v457 = vpop.permute.xlu0 %456
          %458 = vrot.lane.b32.xlu0 %v434, 17
          %v459 = vpop.permute.xlu0 %458
          %460 = vrot.lane.b32.xlu0 %v435, 17
          %v461 = vpop.permute.xlu0 %460
          %462 = vrot.lane.b32.xlu0 %v436, 17
          %v463 = vpop.permute.xlu0 %462
          %464 = vrot.lane.b32.xlu0 %v437, 17
          %v465 = vpop.permute.xlu0 %464
          %466 = vrot.lane.b32.xlu0 %v438, 17
          %v467 = vpop.permute.xlu0 %466
          %468 = vrot.lane.b32.xlu0 %v439, 17
          %v469 = vpop.permute.xlu0 %468
          %v470 = vrot.slane %v451, 4
          %v471 = vrot.slane %v453, 4
          %v472 = vrot.slane %v455, 4
          %v473 = vrot.slane %v457, 4
          %v474 = vrot.slane %v459, 4
          %v475 = vrot.slane %v461, 4
          %v476 = vrot.slane %v463, 4
          %v477 = vrot.slane %v465, 4
          %v478 = vrot.slane %v467, 4
          %v479 = vrot.slane %v469, 4
          %v480 = vsel %vm306, %v470, %v471
          %vm481 = vcmask 138240
          %v482 = vsel %vm481, %v451, %v480
          %v483 = vsel %vm481, %v453, %v471
          %v484 = vsel %vm306, %v472, %v473
          %v485 = vsel %vm481, %v455, %v484
          %v486 = vsel %vm481, %v457, %v473
          %v487 = vsel %vm306, %v474, %v475
          %v488 = vsel %vm481, %v459, %v487
          %v489 = vsel %vm481, %v461, %v475
          %v490 = vsel %vm306, %v476, %v477
          %v491 = vsel %vm481, %v463, %v490
          %v492 = vsel %vm481, %v465, %v477
          %v493 = vsel %vm306, %v478, %v479
          %v494 = vsel %vm481, %v467, %v493
          %v495 = vsel %vm481, %v469, %v479
          %506 = vst [vmem:[#allocation3 + $0x78] sm:$0xff] %v482
          %507 = vst.msk [vmem:[#allocation3 + $0x80] sm:$0xf] %vm334, %v483
          %508 = vst [vmem:[#allocation3 + $0x84] sm:$0xff] %v485
          %509 = vst.msk [vmem:[#allocation3 + $0x8c] sm:$0xf] %vm334, %v486
          %510 = vst [vmem:[#allocation3 + $0x90] sm:$0xff] %v488
          %511 = vst.msk [vmem:[#allocation3 + $0x98] sm:$0xf] %vm334, %v489
          %512 = vst [vmem:[#allocation3 + $0x9c] sm:$0xff] %v491
          %513 = vst.msk [vmem:[#allocation3 + $0xa4] sm:$0xf] %vm334, %v492
          %514 = vst [vmem:[#allocation3 + $0xa8] sm:$0xff] %v494
          %515 = vst.msk [vmem:[#allocation3 + $0xb0] sm:$0xf] %vm334, %v495
          %v516 = vld [vmem:[#allocation2] sm:$0xff]
          %v517 = vld [vmem:[#allocation2 + $0x8] sm:$0xff]
          %v518 = vld [vmem:[#allocation2 + $0x10] sm:$0xff]
          %v519 = vld [vmem:[#allocation2 + $0x18] sm:$0xff]
          %v520 = vld [vmem:[#allocation2 + $0x20] sm:$0xff]
          %v521 = vld [vmem:[#allocation2 + $0x28] sm:$0xff]
          %v522 = vld [vmem:[#allocation2 + $0x30] sm:$0xff]
          %v523 = vld [vmem:[#allocation2 + $0x38] sm:$0xff]
          %v524 = vld [vmem:[#allocation2 + $0x40] sm:$0xff]
          %v525 = vld [vmem:[#allocation2 + $0x48] sm:$0xff]
          %536 = vrot.lane.b32.xlu0 %v516, 1
          %v537 = vpop.permute.xlu0 %536
          %538 = vrot.lane.b32.xlu0 %v517, 1
          %v539 = vpop.permute.xlu0 %538
          %540 = vrot.lane.b32.xlu0 %v518, 1
          %v541 = vpop.permute.xlu0 %540
          %542 = vrot.lane.b32.xlu0 %v519, 1
          %v543 = vpop.permute.xlu0 %542
          %544 = vrot.lane.b32.xlu0 %v520, 1
          %v545 = vpop.permute.xlu0 %544
          %546 = vrot.lane.b32.xlu0 %v521, 1
          %v547 = vpop.permute.xlu0 %546
          %548 = vrot.lane.b32.xlu0 %v522, 1
          %v549 = vpop.permute.xlu0 %548
          %550 = vrot.lane.b32.xlu0 %v523, 1
          %v551 = vpop.permute.xlu0 %550
          %552 = vrot.lane.b32.xlu0 %v524, 1
          %v553 = vpop.permute.xlu0 %552
          %554 = vrot.lane.b32.xlu0 %v525, 1
          %v555 = vpop.permute.xlu0 %554
          %v556 = vrot.slane %v537, 4
          %v557 = vrot.slane %v539, 4
          %v558 = vrot.slane %v541, 4
          %v559 = vrot.slane %v543, 4
          %v560 = vrot.slane %v545, 4
          %v561 = vrot.slane %v547, 4
          %v562 = vrot.slane %v549, 4
          %v563 = vrot.slane %v551, 4
          %v564 = vrot.slane %v553, 4
          %v565 = vrot.slane %v555, 4
          %v566 = vsel %vm306, %v556, %v557
          %vm567 = vcmask 7168
          %v568 = vsel %vm567, %v537, %v566
          %v569 = vsel %vm567, %v539, %v557
          %v570 = vsel %vm306, %v558, %v559
          %v571 = vsel %vm567, %v541, %v570
          %v572 = vsel %vm567, %v543, %v559
          %v573 = vsel %vm306, %v560, %v561
          %v574 = vsel %vm567, %v545, %v573
          %v575 = vsel %vm567, %v547, %v561
          %v576 = vsel %vm306, %v562, %v563
          %v577 = vsel %vm567, %v549, %v576
          %v578 = vsel %vm567, %v551, %v563
          %v579 = vsel %vm306, %v564, %v565
          %v580 = vsel %vm567, %v553, %v579
          %v581 = vsel %vm567, %v555, %v565
          %592 = vst [vmem:[#allocation3 + $0xb4] sm:$0xff] %v568
          %593 = vst.msk [vmem:[#allocation3 + $0xbc] sm:$0xf] %vm334, %v569
          %594 = vst [vmem:[#allocation3 + $0xc0] sm:$0xff] %v571
          %595 = vst.msk [vmem:[#allocation3 + $0xc8] sm:$0xf] %vm334, %v572
          %596 = vst [vmem:[#allocation3 + $0xcc] sm:$0xff] %v574
          %597 = vst.msk [vmem:[#allocation3 + $0xd4] sm:$0xf] %vm334, %v575
          %598 = vst [vmem:[#allocation3 + $0xd8] sm:$0xff] %v577
          %599 = vst.msk [vmem:[#allocation3 + $0xe0] sm:$0xf] %vm334, %v578
          %600 = vst [vmem:[#allocation3 + $0xe4] sm:$0xff] %v580
          %601 = vst.msk [vmem:[#allocation3 + $0xec] sm:$0xf] %vm334, %v581
          %v602 = vld [vmem:[#allocation2 + $0x4] sm:$0xff]
          %v603 = vld [vmem:[#allocation2 + $0xc] sm:$0xf]
          %v604 = vld [vmem:[#allocation2 + $0x14] sm:$0xff]
          %v605 = vld [vmem:[#allocation2 + $0x1c] sm:$0xf]
          %v606 = vld [vmem:[#allocation2 + $0x24] sm:$0xff]
          %v607 = vld [vmem:[#allocation2 + $0x2c] sm:$0xf]
          %v608 = vld [vmem:[#allocation2 + $0x34] sm:$0xff]
          %v609 = vld [vmem:[#allocation2 + $0x3c] sm:$0xf]
          %v610 = vld [vmem:[#allocation2 + $0x44] sm:$0xff]
          %v611 = vld [vmem:[#allocation2 + $0x4c] sm:$0xf]
          %612 = vst [vmem:[#allocation3 + $0xf0] sm:$0xff] %v602
          %613 = vst.msk [vmem:[#allocation3 + $0xf8] sm:$0xf] %vm334, %v603
          %614 = vst [vmem:[#allocation3 + $0xfc] sm:$0xff] %v604
          %615 = vst.msk [vmem:[#allocation3 + $0x104] sm:$0xf] %vm334, %v605
          %616 = vst [vmem:[#allocation3 + $0x108] sm:$0xff] %v606
          %617 = vst.msk [vmem:[#allocation3 + $0x110] sm:$0xf] %vm334, %v607
          %618 = vst [vmem:[#allocation3 + $0x114] sm:$0xff] %v608
          %619 = vst.msk [vmem:[#allocation3 + $0x11c] sm:$0xf] %vm334, %v609
          %620 = vst [vmem:[#allocation3 + $0x120] sm:$0xff] %v610
          %621 = vst.msk [vmem:[#allocation3 + $0x128] sm:$0xf] %vm334, %v611
          %v622 = vld [vmem:[#allocation2 + $0x4] sm:$0xff]
          %v623 = vld [vmem:[#allocation2 + $0xc] sm:$0xf]
          %v624 = vld [vmem:[#allocation2 + $0x14] sm:$0xff]
          %v625 = vld [vmem:[#allocation2 + $0x1c] sm:$0xf]
          %v626 = vld [vmem:[#allocation2 + $0x24] sm:$0xff]
          %v627 = vld [vmem:[#allocation2 + $0x2c] sm:$0xf]
          %v628 = vld [vmem:[#allocation2 + $0x34] sm:$0xff]
          %v629 = vld [vmem:[#allocation2 + $0x3c] sm:$0xf]
          %v630 = vld [vmem:[#allocation2 + $0x44] sm:$0xff]
          %v631 = vld [vmem:[#allocation2 + $0x4c] sm:$0xf]
          %642 = vrot.lane.b32.xlu0 %v622, 127
          %v643 = vpop.permute.xlu0 %642
          %644 = vrot.lane.b32.xlu0 %v623, 127
          %v645 = vpop.permute.xlu0 %644
          %646 = vrot.lane.b32.xlu0 %v624, 127
          %v647 = vpop.permute.xlu0 %646
          %648 = vrot.lane.b32.xlu0 %v625, 127
          %v649 = vpop.permute.xlu0 %648
          %650 = vrot.lane.b32.xlu0 %v626, 127
          %v651 = vpop.permute.xlu0 %650
          %652 = vrot.lane.b32.xlu0 %v627, 127
          %v653 = vpop.permute.xlu0 %652
          %654 = vrot.lane.b32.xlu0 %v628, 127
          %v655 = vpop.permute.xlu0 %654
          %656 = vrot.lane.b32.xlu0 %v629, 127
          %v657 = vpop.permute.xlu0 %656
          %658 = vrot.lane.b32.xlu0 %v630, 127
          %v659 = vpop.permute.xlu0 %658
          %660 = vrot.lane.b32.xlu0 %v631, 127
          %v661 = vpop.permute.xlu0 %660
          %v662 = vrot.slane %v643, 4
          %v663 = vrot.slane %v645, 4
          %v664 = vrot.slane %v647, 4
          %v665 = vrot.slane %v649, 4
          %v666 = vrot.slane %v651, 4
          %v667 = vrot.slane %v653, 4
          %v668 = vrot.slane %v655, 4
          %v669 = vrot.slane %v657, 4
          %v670 = vrot.slane %v659, 4
          %v671 = vrot.slane %v661, 4
          %v672 = vsel %vm306, %v662, %v663
          %vm673 = vcmask 1039360
          %v674 = vsel %vm673, %v643, %v672
          %v675 = vsel %vm306, %v664, %v665
          %v676 = vsel %vm673, %v647, %v675
          %v677 = vsel %vm306, %v666, %v667
          %v678 = vsel %vm673, %v651, %v677
          %v679 = vsel %vm306, %v668, %v669
          %v680 = vsel %vm673, %v655, %v679
          %v681 = vsel %vm306, %v670, %v671
          %v682 = vsel %vm673, %v659, %v681
          %693 = vst [vmem:[#allocation3 + $0x12c] sm:$0xff] %v674
          %694 = vst.msk [vmem:[#allocation3 + $0x134] sm:$0xf] %vm334, %v645
          %695 = vst [vmem:[#allocation3 + $0x138] sm:$0xff] %v676
          %696 = vst.msk [vmem:[#allocation3 + $0x140] sm:$0xf] %vm334, %v649
          %697 = vst [vmem:[#allocation3 + $0x144] sm:$0xff] %v678
          %698 = vst.msk [vmem:[#allocation3 + $0x14c] sm:$0xf] %vm334, %v653
          %699 = vst [vmem:[#allocation3 + $0x150] sm:$0xff] %v680
          %700 = vst.msk [vmem:[#allocation3 + $0x158] sm:$0xf] %vm334, %v657
          %701 = vst [vmem:[#allocation3 + $0x15c] sm:$0xff] %v682
          %702 = vst.msk [vmem:[#allocation3 + $0x164] sm:$0xf] %vm334, %v661
          %v703 = vld [vmem:[#allocation2 + $0x4] sm:$0xff]
          %v704 = vld [vmem:[#allocation2 + $0xc] sm:$0xf]
          %v705 = vld [vmem:[#allocation2 + $0x14] sm:$0xff]
          %v706 = vld [vmem:[#allocation2 + $0x1c] sm:$0xf]
          %v707 = vld [vmem:[#allocation2 + $0x24] sm:$0xff]
          %v708 = vld [vmem:[#allocation2 + $0x2c] sm:$0xf]
          %v709 = vld [vmem:[#allocation2 + $0x34] sm:$0xff]
          %v710 = vld [vmem:[#allocation2 + $0x3c] sm:$0xf]
          %v711 = vld [vmem:[#allocation2 + $0x44] sm:$0xff]
          %v712 = vld [vmem:[#allocation2 + $0x4c] sm:$0xf]
          %723 = vrot.lane.b32.xlu0 %v703, 111
          %v724 = vpop.permute.xlu0 %723
          %725 = vrot.lane.b32.xlu0 %v704, 111
          %v726 = vpop.permute.xlu0 %725
          %727 = vrot.lane.b32.xlu0 %v705, 111
          %v728 = vpop.permute.xlu0 %727
          %729 = vrot.lane.b32.xlu0 %v706, 111
          %v730 = vpop.permute.xlu0 %729
          %731 = vrot.lane.b32.xlu0 %v707, 111
          %v732 = vpop.permute.xlu0 %731
          %733 = vrot.lane.b32.xlu0 %v708, 111
          %v734 = vpop.permute.xlu0 %733
          %735 = vrot.lane.b32.xlu0 %v709, 111
          %v736 = vpop.permute.xlu0 %735
          %737 = vrot.lane.b32.xlu0 %v710, 111
          %v738 = vpop.permute.xlu0 %737
          %739 = vrot.lane.b32.xlu0 %v711, 111
          %v740 = vpop.permute.xlu0 %739
          %741 = vrot.lane.b32.xlu0 %v712, 111
          %v742 = vpop.permute.xlu0 %741
          %v743 = vrot.slane %v724, 4
          %v744 = vrot.slane %v726, 4
          %v745 = vrot.slane %v728, 4
          %v746 = vrot.slane %v730, 4
          %v747 = vrot.slane %v732, 4
          %v748 = vrot.slane %v734, 4
          %v749 = vrot.slane %v736, 4
          %v750 = vrot.slane %v738, 4
          %v751 = vrot.slane %v740, 4
          %v752 = vrot.slane %v742, 4
          %v753 = vsel %vm306, %v743, %v744
          %vm754 = vcmask 908288
          %v755 = vsel %vm754, %v724, %v753
          %v756 = vsel %vm306, %v745, %v746
          %v757 = vsel %vm754, %v728, %v756
          %v758 = vsel %vm306, %v747, %v748
          %v759 = vsel %vm754, %v732, %v758
          %v760 = vsel %vm306, %v749, %v750
          %v761 = vsel %vm754, %v736, %v760
          %v762 = vsel %vm306, %v751, %v752
          %v763 = vsel %vm754, %v740, %v762
          %774 = vst [vmem:[#allocation3 + $0x168] sm:$0xff] %v755
          %775 = vst.msk [vmem:[#allocation3 + $0x170] sm:$0xf] %vm334, %v726
          %776 = vst [vmem:[#allocation3 + $0x174] sm:$0xff] %v757
          %777 = vst.msk [vmem:[#allocation3 + $0x17c] sm:$0xf] %vm334, %v730
          %778 = vst [vmem:[#allocation3 + $0x180] sm:$0xff] %v759
          %779 = vst.msk [vmem:[#allocation3 + $0x188] sm:$0xf] %vm334, %v734
          %780 = vst [vmem:[#allocation3 + $0x18c] sm:$0xff] %v761
          %781 = vst.msk [vmem:[#allocation3 + $0x194] sm:$0xf] %vm334, %v738
          %782 = vst [vmem:[#allocation3 + $0x198] sm:$0xff] %v763
          %783 = vst.msk [vmem:[#allocation3 + $0x1a0] sm:$0xf] %vm334, %v742
          %v784 = vld [vmem:[#allocation2 + $0x4] sm:$0xff]
          %v785 = vld [vmem:[#allocation2 + $0xc] sm:$0xf]
          %v786 = vld [vmem:[#allocation2 + $0x14] sm:$0xff]
          %v787 = vld [vmem:[#allocation2 + $0x1c] sm:$0xf]
          %v788 = vld [vmem:[#allocation2 + $0x24] sm:$0xff]
          %v789 = vld [vmem:[#allocation2 + $0x2c] sm:$0xf]
          %v790 = vld [vmem:[#allocation2 + $0x34] sm:$0xff]
          %v791 = vld [vmem:[#allocation2 + $0x3c] sm:$0xf]
          %v792 = vld [vmem:[#allocation2 + $0x44] sm:$0xff]
          %v793 = vld [vmem:[#allocation2 + $0x4c] sm:$0xf]
          %804 = vrot.lane.b32.xlu0 %v784, 110
          %v805 = vpop.permute.xlu0 %804
          %806 = vrot.lane.b32.xlu0 %v785, 110
          %v807 = vpop.permute.xlu0 %806
          %808 = vrot.lane.b32.xlu0 %v786, 110
          %v809 = vpop.permute.xlu0 %808
          %810 = vrot.lane.b32.xlu0 %v787, 110
          %v811 = vpop.permute.xlu0 %810
          %812 = vrot.lane.b32.xlu0 %v788, 110
          %v813 = vpop.permute.xlu0 %812
          %814 = vrot.lane.b32.xlu0 %v789, 110
          %v815 = vpop.permute.xlu0 %814
          %816 = vrot.lane.b32.xlu0 %v790, 110
          %v817 = vpop.permute.xlu0 %816
          %818 = vrot.lane.b32.xlu0 %v791, 110
          %v819 = vpop.permute.xlu0 %818
          %820 = vrot.lane.b32.xlu0 %v792, 110
          %v821 = vpop.permute.xlu0 %820
          %822 = vrot.lane.b32.xlu0 %v793, 110
          %v823 = vpop.permute.xlu0 %822
          %v824 = vrot.slane %v805, 4
          %v825 = vrot.slane %v807, 4
          %v826 = vrot.slane %v809, 4
          %v827 = vrot.slane %v811, 4
          %v828 = vrot.slane %v813, 4
          %v829 = vrot.slane %v815, 4
          %v830 = vrot.slane %v817, 4
          %v831 = vrot.slane %v819, 4
          %v832 = vrot.slane %v821, 4
          %v833 = vrot.slane %v823, 4
          %v834 = vsel %vm306, %v824, %v825
          %vm835 = vcmask 900096
          %v836 = vsel %vm835, %v805, %v834
          %v837 = vsel %vm306, %v826, %v827
          %v838 = vsel %vm835, %v809, %v837
          %v839 = vsel %vm306, %v828, %v829
          %v840 = vsel %vm835, %v813, %v839
          %v841 = vsel %vm306, %v830, %v831
          %v842 = vsel %vm835, %v817, %v841
          %v843 = vsel %vm306, %v832, %v833
          %v844 = vsel %vm835, %v821, %v843
          %855 = vst [vmem:[#allocation3 + $0x1a4] sm:$0xff] %v836
          %856 = vst.msk [vmem:[#allocation3 + $0x1ac] sm:$0xf] %vm334, %v807
          %857 = vst [vmem:[#allocation3 + $0x1b0] sm:$0xff] %v838
          %858 = vst.msk [vmem:[#allocation3 + $0x1b8] sm:$0xf] %vm334, %v811
          %859 = vst [vmem:[#allocation3 + $0x1bc] sm:$0xff] %v840
          %860 = vst.msk [vmem:[#allocation3 + $0x1c4] sm:$0xf] %vm334, %v815
          %861 = vst [vmem:[#allocation3 + $0x1c8] sm:$0xff] %v842
          %862 = vst.msk [vmem:[#allocation3 + $0x1d0] sm:$0xf] %vm334, %v819
          %863 = vst [vmem:[#allocation3 + $0x1d4] sm:$0xff] %v844
          %864 = vst.msk [vmem:[#allocation3 + $0x1dc] sm:$0xf] %vm334, %v823
          %v865 = vld [vmem:[#allocation2 + $0x4] sm:$0xff]
          %v866 = vld [vmem:[#allocation2 + $0xc] sm:$0xf]
          %v867 = vld [vmem:[#allocation2 + $0x14] sm:$0xff]
          %v868 = vld [vmem:[#allocation2 + $0x1c] sm:$0xf]
          %v869 = vld [vmem:[#allocation2 + $0x24] sm:$0xff]
          %v870 = vld [vmem:[#allocation2 + $0x2c] sm:$0xf]
          %v871 = vld [vmem:[#allocation2 + $0x34] sm:$0xff]
          %v872 = vld [vmem:[#allocation2 + $0x3c] sm:$0xf]
          %v873 = vld [vmem:[#allocation2 + $0x44] sm:$0xff]
          %v874 = vld [vmem:[#allocation2 + $0x4c] sm:$0xf]
          %885 = vrot.lane.b32.xlu0 %v865, 109
          %v886 = vpop.permute.xlu0 %885
          %887 = vrot.lane.b32.xlu0 %v866, 109
          %v888 = vpop.permute.xlu0 %887
          %889 = vrot.lane.b32.xlu0 %v867, 109
          %v890 = vpop.permute.xlu0 %889
          %891 = vrot.lane.b32.xlu0 %v868, 109
          %v892 = vpop.permute.xlu0 %891
          %893 = vrot.lane.b32.xlu0 %v869, 109
          %v894 = vpop.permute.xlu0 %893
          %895 = vrot.lane.b32.xlu0 %v870, 109
          %v896 = vpop.permute.xlu0 %895
          %897 = vrot.lane.b32.xlu0 %v871, 109
          %v898 = vpop.permute.xlu0 %897
          %899 = vrot.lane.b32.xlu0 %v872, 109
          %v900 = vpop.permute.xlu0 %899
          %901 = vrot.lane.b32.xlu0 %v873, 109
          %v902 = vpop.permute.xlu0 %901
          %903 = vrot.lane.b32.xlu0 %v874, 109
          %v904 = vpop.permute.xlu0 %903
          %v905 = vrot.slane %v886, 4
          %v906 = vrot.slane %v888, 4
          %v907 = vrot.slane %v890, 4
          %v908 = vrot.slane %v892, 4
          %v909 = vrot.slane %v894, 4
          %v910 = vrot.slane %v896, 4
          %v911 = vrot.slane %v898, 4
          %v912 = vrot.slane %v900, 4
          %v913 = vrot.slane %v902, 4
          %v914 = vrot.slane %v904, 4
          %v915 = vsel %vm306, %v905, %v906
          %vm916 = vcmask 891904
          %v917 = vsel %vm916, %v886, %v915
          %v918 = vsel %vm306, %v907, %v908
          %v919 = vsel %vm916, %v890, %v918
          %v920 = vsel %vm306, %v909, %v910
          %v921 = vsel %vm916, %v894, %v920
          %v922 = vsel %vm306, %v911, %v912
          %v923 = vsel %vm916, %v898, %v922
          %v924 = vsel %vm306, %v913, %v914
          %v925 = vsel %vm916, %v902, %v924
          %936 = vst [vmem:[#allocation3 + $0x1e0] sm:$0xff] %v917
          %937 = vst.msk [vmem:[#allocation3 + $0x1e8] sm:$0xf] %vm334, %v888
          %938 = vst [vmem:[#allocation3 + $0x1ec] sm:$0xff] %v919
          %939 = vst.msk [vmem:[#allocation3 + $0x1f4] sm:$0xf] %vm334, %v892
          %940 = vst [vmem:[#allocation3 + $0x1f8] sm:$0xff] %v921
          %941 = vst.msk [vmem:[#allocation3 + $0x200] sm:$0xf] %vm334, %v896
          %942 = vst [vmem:[#allocation3 + $0x204] sm:$0xff] %v923
          %943 = vst.msk [vmem:[#allocation3 + $0x20c] sm:$0xf] %vm334, %v900
          %944 = vst [vmem:[#allocation3 + $0x210] sm:$0xff] %v925
          %945 = vst.msk [vmem:[#allocation3 + $0x218] sm:$0xf] %vm334, %v904
          %v946 = vld [vmem:[%s1] sm:$0xff]
          %v947 = vld [vmem:[%s1 + $0x8] sm:$0xf]
          %v948 = vld [vmem:[%s1 + $0xc] sm:$0xff]
          %v949 = vld [vmem:[%s1 + $0x14] sm:$0xf]
          %v950 = vld [vmem:[%s1 + $0x18] sm:$0xff]
          %v951 = vld [vmem:[%s1 + $0x20] sm:$0xf]
          %v952 = vld [vmem:[%s1 + $0x24] sm:$0xff]
          %v953 = vld [vmem:[%s1 + $0x2c] sm:$0xf]
          %v954 = vld [vmem:[%s1 + $0x30] sm:$0xff]
          %v955 = vld [vmem:[%s1 + $0x38] sm:$0xf]
          %v956 = vld [vmem:[%s1 + $0x3c] sm:$0xff]
          %v957 = vld [vmem:[%s1 + $0x44] sm:$0xf]
          %v958 = vld [vmem:[%s1 + $0x48] sm:$0xff]
          %v959 = vld [vmem:[%s1 + $0x50] sm:$0xf]
          %v960 = vld [vmem:[%s1 + $0x54] sm:$0xff]
          %v961 = vld [vmem:[%s1 + $0x5c] sm:$0xf]
          %v962 = vld [vmem:[%s1 + $0x60] sm:$0xff]
          %v963 = vld [vmem:[%s1 + $0x68] sm:$0xf]
          %v964 = vld [vmem:[%s1 + $0x6c] sm:$0xff]
          %v965 = vld [vmem:[%s1 + $0x74] sm:$0xf]
          %v966 = vld [vmem:[%s1 + $0x78] sm:$0xff]
          %v967 = vld [vmem:[%s1 + $0x80] sm:$0xf]
          %v968 = vld [vmem:[%s1 + $0x84] sm:$0xff]
          %v969 = vld [vmem:[%s1 + $0x8c] sm:$0xf]
          %v970 = vld [vmem:[%s1 + $0x90] sm:$0xff]
          %v971 = vld [vmem:[%s1 + $0x98] sm:$0xf]
          %v972 = vld [vmem:[%s1 + $0x9c] sm:$0xff]
          %v973 = vld [vmem:[%s1 + $0xa4] sm:$0xf]
          %v974 = vld [vmem:[%s1 + $0xa8] sm:$0xff]
          %v975 = vld [vmem:[%s1 + $0xb0] sm:$0xf]
          %v976 = vld [vmem:[%s1 + $0xb4] sm:$0xff]
          %v977 = vld [vmem:[%s1 + $0xbc] sm:$0xf]
          %v978 = vld [vmem:[#allocation3] sm:$0xff]
          %v979 = vld [vmem:[#allocation3 + $0x8] sm:$0xf]
          %v980 = vld [vmem:[#allocation3 + $0xc] sm:$0xff]
          %v981 = vld [vmem:[#allocation3 + $0x14] sm:$0xf]
          %v982 = vld [vmem:[#allocation3 + $0x18] sm:$0xff]
          %v983 = vld [vmem:[#allocation3 + $0x20] sm:$0xf]
          %v984 = vld [vmem:[#allocation3 + $0x24] sm:$0xff]
          %v985 = vld [vmem:[#allocation3 + $0x2c] sm:$0xf]
          %v986 = vld [vmem:[#allocation3 + $0x30] sm:$0xff]
          %v987 = vld [vmem:[#allocation3 + $0x38] sm:$0xf]
          %v988 = vld [vmem:[#allocation3 + $0x3c] sm:$0xff]
          %v989 = vld [vmem:[#allocation3 + $0x44] sm:$0xf]
          %v990 = vld [vmem:[#allocation3 + $0x48] sm:$0xff]
          %v991 = vld [vmem:[#allocation3 + $0x50] sm:$0xf]
          %v992 = vld [vmem:[#allocation3 + $0x54] sm:$0xff]
          %v993 = vld [vmem:[#allocation3 + $0x5c] sm:$0xf]
          %v994 = vld [vmem:[#allocation3 + $0x60] sm:$0xff]
          %v995 = vld [vmem:[#allocation3 + $0x68] sm:$0xf]
          %v996 = vld [vmem:[#allocation3 + $0x6c] sm:$0xff]
          %v997 = vld [vmem:[#allocation3 + $0x74] sm:$0xf]
          %v998 = vld [vmem:[#allocation3 + $0x78] sm:$0xff]
          %v999 = vld [vmem:[#allocation3 + $0x80] sm:$0xf]
          %v1000 = vld [vmem:[#allocation3 + $0x84] sm:$0xff]
          %v1001 = vld [vmem:[#allocation3 + $0x8c] sm:$0xf]
          %v1002 = vld [vmem:[#allocation3 + $0x90] sm:$0xff]
          %v1003 = vld [vmem:[#allocation3 + $0x98] sm:$0xf]
          %v1004 = vld [vmem:[#allocation3 + $0x9c] sm:$0xff]
          %v1005 = vld [vmem:[#allocation3 + $0xa4] sm:$0xf]
          %v1006 = vld [vmem:[#allocation3 + $0xa8] sm:$0xff]
          %v1007 = vld [vmem:[#allocation3 + $0xb0] sm:$0xf]
          %v1008 = vld [vmem:[#allocation3 + $0xb4] sm:$0xff]
          %v1009 = vld [vmem:[#allocation3 + $0xbc] sm:$0xf]
          %v1010 = vld [vmem:[#allocation3 + $0xc0] sm:$0xff]
          %v1011 = vld [vmem:[#allocation3 + $0xc8] sm:$0xf]
          %v1012 = vld [vmem:[#allocation3 + $0xcc] sm:$0xff]
          %v1013 = vld [vmem:[#allocation3 + $0xd4] sm:$0xf]
          %v1014 = vld [vmem:[#allocation3 + $0xd8] sm:$0xff]
          %v1015 = vld [vmem:[#allocation3 + $0xe0] sm:$0xf]
          %v1016 = vld [vmem:[#allocation3 + $0xe4] sm:$0xff]
          %v1017 = vld [vmem:[#allocation3 + $0xec] sm:$0xf]
          %v1018 = vld [vmem:[#allocation3 + $0xf0] sm:$0xff]
          %v1019 = vld [vmem:[#allocation3 + $0xf8] sm:$0xf]
          %v1020 = vld [vmem:[#allocation3 + $0xfc] sm:$0xff]
          %v1021 = vld [vmem:[#allocation3 + $0x104] sm:$0xf]
          %v1022 = vld [vmem:[#allocation3 + $0x108] sm:$0xff]
          %v1023 = vld [vmem:[#allocation3 + $0x110] sm:$0xf]
          %v1024 = vld [vmem:[#allocation3 + $0x114] sm:$0xff]
          %v1025 = vld [vmem:[#allocation3 + $0x11c] sm:$0xf]
          %v1026 = vld [vmem:[#allocation3 + $0x120] sm:$0xff]
          %v1027 = vld [vmem:[#allocation3 + $0x128] sm:$0xf]
          %v1028 = vld [vmem:[#allocation3 + $0x12c] sm:$0xff]
          %v1029 = vld [vmem:[#allocation3 + $0x134] sm:$0xf]
          %v1030 = vld [vmem:[#allocation3 + $0x138] sm:$0xff]
          %v1031 = vld [vmem:[#allocation3 + $0x140] sm:$0xf]
          %v1032 = vld [vmem:[#allocation3 + $0x144] sm:$0xff]
          %v1033 = vld [vmem:[#allocation3 + $0x14c] sm:$0xf]
          %v1034 = vld [vmem:[#allocation3 + $0x150] sm:$0xff]
          %v1035 = vld [vmem:[#allocation3 + $0x158] sm:$0xf]
          %v1036 = vld [vmem:[#allocation3 + $0x15c] sm:$0xff]
          %v1037 = vld [vmem:[#allocation3 + $0x164] sm:$0xf]
          %v1038 = vld [vmem:[#allocation3 + $0x168] sm:$0xff]
          %v1039 = vld [vmem:[#allocation3 + $0x170] sm:$0xf]
          %v1040 = vld [vmem:[#allocation3 + $0x174] sm:$0xff]
          %v1041 = vld [vmem:[#allocation3 + $0x17c] sm:$0xf]
          %v1042 = vld [vmem:[#allocation3 + $0x180] sm:$0xff]
          %v1043 = vld [vmem:[#allocation3 + $0x188] sm:$0xf]
          %v1044 = vld [vmem:[#allocation3 + $0x18c] sm:$0xff]
          %v1045 = vld [vmem:[#allocation3 + $0x194] sm:$0xf]
          %v1046 = vld [vmem:[#allocation3 + $0x198] sm:$0xff]
          %v1047 = vld [vmem:[#allocation3 + $0x1a0] sm:$0xf]
          %v1048 = vld [vmem:[#allocation3 + $0x1a4] sm:$0xff]
          %v1049 = vld [vmem:[#allocation3 + $0x1ac] sm:$0xf]
          %v1050 = vld [vmem:[#allocation3 + $0x1b0] sm:$0xff]
          %v1051 = vld [vmem:[#allocation3 + $0x1b8] sm:$0xf]
          %v1052 = vld [vmem:[#allocation3 + $0x1bc] sm:$0xff]
          %v1053 = vld [vmem:[#allocation3 + $0x1c4] sm:$0xf]
          %v1054 = vld [vmem:[#allocation3 + $0x1c8] sm:$0xff]
          %v1055 = vld [vmem:[#allocation3 + $0x1d0] sm:$0xf]
          %v1056 = vld [vmem:[#allocation3 + $0x1d4] sm:$0xff]
          %v1057 = vld [vmem:[#allocation3 + $0x1dc] sm:$0xf]
          %v1058 = vld [vmem:[#allocation3 + $0x1e0] sm:$0xff]
          %v1059 = vld [vmem:[#allocation3 + $0x1e8] sm:$0xf]
          %v1060 = vld [vmem:[#allocation3 + $0x1ec] sm:$0xff]
          %v1061 = vld [vmem:[#allocation3 + $0x1f4] sm:$0xf]
          %v1062 = vld [vmem:[#allocation3 + $0x1f8] sm:$0xff]
          %v1063 = vld [vmem:[#allocation3 + $0x200] sm:$0xf]
          %v1064 = vld [vmem:[#allocation3 + $0x204] sm:$0xff]
          %v1065 = vld [vmem:[#allocation3 + $0x20c] sm:$0xf]
          %v1066 = vld [vmem:[#allocation3 + $0x210] sm:$0xff]
          %v1067 = vld [vmem:[#allocation3 + $0x218] sm:$0xf]
          %v1068 = vld [vmem:[%s2] sm:$0xff]
          %v1069 = vld [vmem:[%s2 + $0x8] sm:$0xff]
          %v1070 = vld [vmem:[%s2 + $0x10] sm:$0xff]
          %v1071 = vld [vmem:[%s2 + $0x18] sm:$0xff]
          %v1072 = vld [vmem:[%s2 + $0x20] sm:$0xff]
          %v1073 = vld [vmem:[%s2 + $0x28] sm:$0xff]
          %v1074 = vld [vmem:[%s2 + $0x30] sm:$0xff]
          %v1075 = vld [vmem:[%s2 + $0x38] sm:$0xff]
          %v1076 = vld [vmem:[%s2 + $0x40] sm:$0xff]
          %v1077 = vld [vmem:[%s2 + $0x48] sm:$0xff]
          %v1078 = vld [vmem:[%s2 + $0x50] sm:$0xff]
          %v1079 = vld [vmem:[%s2 + $0x58] sm:$0xff]
          %v1080 = vld [vmem:[%s2 + $0x60] sm:$0xff]
          %v1081 = vld [vmem:[%s2 + $0x68] sm:$0xff]
          %v1082 = vld [vmem:[%s2 + $0x70] sm:$0xff]
          %v1083 = vld [vmem:[%s2 + $0x78] sm:$0xff]
          %1085 = vset.pattern.permute.xlu0 0
          %1086 = vperm.xlu0 %1085, %v1068
          %v1087 = vpop.permute.xlu0 %1086
          %1090 = vset.pattern.permute.xlu0 0
          %1091 = vperm.xlu0 %1090, %v1069
          %v1092 = vpop.permute.xlu0 %1091
          %1095 = vset.pattern.permute.xlu0 0
          %1096 = vperm.xlu0 %1095, %v1070
          %v1097 = vpop.permute.xlu0 %1096
          %1100 = vset.pattern.permute.xlu0 0
          %1101 = vperm.xlu0 %1100, %v1071
          %v1102 = vpop.permute.xlu0 %1101
          %1105 = vset.pattern.permute.xlu0 0
          %1106 = vperm.xlu0 %1105, %v1072
          %v1107 = vpop.permute.xlu0 %1106
          %1110 = vset.pattern.permute.xlu0 0
          %1111 = vperm.xlu0 %1110, %v1073
          %v1112 = vpop.permute.xlu0 %1111
          %1115 = vset.pattern.permute.xlu0 0
          %1116 = vperm.xlu0 %1115, %v1074
          %v1117 = vpop.permute.xlu0 %1116
          %1120 = vset.pattern.permute.xlu0 0
          %1121 = vperm.xlu0 %1120, %v1075
          %v1122 = vpop.permute.xlu0 %1121
          %1125 = vset.pattern.permute.xlu0 0
          %1126 = vperm.xlu0 %1125, %v1076
          %v1127 = vpop.permute.xlu0 %1126
          %1130 = vset.pattern.permute.xlu0 0
          %1131 = vperm.xlu0 %1130, %v1077
          %v1132 = vpop.permute.xlu0 %1131
          %1135 = vset.pattern.permute.xlu0 0
          %1136 = vperm.xlu0 %1135, %v1078
          %v1137 = vpop.permute.xlu0 %1136
          %1140 = vset.pattern.permute.xlu0 0
          %1141 = vperm.xlu0 %1140, %v1079
          %v1142 = vpop.permute.xlu0 %1141
          %1145 = vset.pattern.permute.xlu0 0
          %1146 = vperm.xlu0 %1145, %v1080
          %v1147 = vpop.permute.xlu0 %1146
          %1150 = vset.pattern.permute.xlu0 0
          %1151 = vperm.xlu0 %1150, %v1081
          %v1152 = vpop.permute.xlu0 %1151
          %1155 = vset.pattern.permute.xlu0 0
          %1156 = vperm.xlu0 %1155, %v1082
          %v1157 = vpop.permute.xlu0 %1156
          %1160 = vset.pattern.permute.xlu0 0
          %1161 = vperm.xlu0 %1160, %v1083
          %v1162 = vpop.permute.xlu0 %1161
          %v1196 = vunpack.c.l.b16 %v946
          %v1197 = vunpack.c.h.b16 %v946
          %v1198 = vunpack.c.l.b16 %v947
          %v1199 = vunpack.c.l.b16 %v948
          %v1200 = vunpack.c.h.b16 %v948
          %v1201 = vunpack.c.l.b16 %v949
          %v1202 = vunpack.c.l.b16 %v950
          %v1203 = vunpack.c.h.b16 %v950
          %v1204 = vunpack.c.l.b16 %v951
          %v1205 = vunpack.c.l.b16 %v952
          %v1206 = vunpack.c.h.b16 %v952
          %v1207 = vunpack.c.l.b16 %v953
          %v1208 = vunpack.c.l.b16 %v954
          %v1209 = vunpack.c.h.b16 %v954
          %v1210 = vunpack.c.l.b16 %v955
          %v1211 = vunpack.c.l.b16 %v956
          %v1212 = vunpack.c.h.b16 %v956
          %v1213 = vunpack.c.l.b16 %v957
          %v1214 = vunpack.c.l.b16 %v958
          %v1215 = vunpack.c.h.b16 %v958
          %v1216 = vunpack.c.l.b16 %v959
          %v1217 = vunpack.c.l.b16 %v960
          %v1218 = vunpack.c.h.b16 %v960
          %v1219 = vunpack.c.l.b16 %v961
          %v1220 = vunpack.c.l.b16 %v962
          %v1221 = vunpack.c.h.b16 %v962
          %v1222 = vunpack.c.l.b16 %v963
          %v1223 = vunpack.c.l.b16 %v964
          %v1224 = vunpack.c.h.b16 %v964
          %v1225 = vunpack.c.l.b16 %v965
          %v1226 = vunpack.c.l.b16 %v966
          %v1227 = vunpack.c.h.b16 %v966
          %v1228 = vunpack.c.l.b16 %v967
          %v1229 = vunpack.c.l.b16 %v968
          %v1230 = vunpack.c.h.b16 %v968
          %v1231 = vunpack.c.l.b16 %v969
          %v1232 = vunpack.c.l.b16 %v970
          %v1233 = vunpack.c.h.b16 %v970
          %v1234 = vunpack.c.l.b16 %v971
          %v1235 = vunpack.c.l.b16 %v972
          %v1236 = vunpack.c.h.b16 %v972
          %v1237 = vunpack.c.l.b16 %v973
          %v1238 = vunpack.c.l.b16 %v974
          %v1239 = vunpack.c.h.b16 %v974
          %v1240 = vunpack.c.l.b16 %v975
          %v1241 = vunpack.c.l.b16 %v976
          %v1242 = vunpack.c.h.b16 %v976
          %v1243 = vunpack.c.l.b16 %v977
          %v1244 = vpack.c.b16 %v1199, %v1196
          %v1245 = vpack.c.b16 %v1200, %v1197
          %v1246 = vpack.c.b16 %v1201, %v1198
          %v1247 = vpack.c.b16 %v1205, %v1202
          %v1248 = vpack.c.b16 %v1206, %v1203
          %v1249 = vpack.c.b16 %v1207, %v1204
          %v1250 = vpack.c.b16 %v1211, %v1208
          %v1251 = vpack.c.b16 %v1212, %v1209
          %v1252 = vpack.c.b16 %v1213, %v1210
          %v1253 = vpack.c.b16 %v1217, %v1214
          %v1254 = vpack.c.b16 %v1218, %v1215
          %v1255 = vpack.c.b16 %v1219, %v1216
          %v1256 = vpack.c.b16 %v1223, %v1220
          %v1257 = vpack.c.b16 %v1224, %v1221
          %v1258 = vpack.c.b16 %v1225, %v1222
          %v1259 = vpack.c.b16 %v1229, %v1226
          %v1260 = vpack.c.b16 %v1230, %v1227
          %v1261 = vpack.c.b16 %v1231, %v1228
          %v1262 = vpack.c.b16 %v1235, %v1232
          %v1263 = vpack.c.b16 %v1236, %v1233
          %v1264 = vpack.c.b16 %v1237, %v1234
          %v1265 = vpack.c.b16 %v1241, %v1238
          %v1266 = vpack.c.b16 %v1242, %v1239
          %v1267 = vpack.c.b16 %v1243, %v1240
          %v1374 = vunpack.c.l.b16 %v978
          %v1375 = vunpack.c.h.b16 %v978
          %v1376 = vunpack.c.l.b16 %v979
          %v1377 = vunpack.c.l.b16 %v980
          %v1378 = vunpack.c.h.b16 %v980
          %v1379 = vunpack.c.l.b16 %v981
          %v1380 = vunpack.c.l.b16 %v982
          %v1381 = vunpack.c.h.b16 %v982
          %v1382 = vunpack.c.l.b16 %v983
          %v1383 = vunpack.c.l.b16 %v984
          %v1384 = vunpack.c.h.b16 %v984
          %v1385 = vunpack.c.l.b16 %v985
          %v1386 = vunpack.c.l.b16 %v986
          %v1387 = vunpack.c.h.b16 %v986
          %v1388 = vunpack.c.l.b16 %v987
          %v1389 = vunpack.c.l.b16 %v988
          %v1390 = vunpack.c.h.b16 %v988
          %v1391 = vunpack.c.l.b16 %v989
          %v1392 = vunpack.c.l.b16 %v990
          %v1393 = vunpack.c.h.b16 %v990
          %v1394 = vunpack.c.l.b16 %v991
          %v1395 = vunpack.c.l.b16 %v992
          %v1396 = vunpack.c.h.b16 %v992
          %v1397 = vunpack.c.l.b16 %v993
          %v1398 = vunpack.c.l.b16 %v994
          %v1399 = vunpack.c.h.b16 %v994
          %v1400 = vunpack.c.l.b16 %v995
          %v1401 = vunpack.c.l.b16 %v996
          %v1402 = vunpack.c.h.b16 %v996
          %v1403 = vunpack.c.l.b16 %v997
          %v1404 = vunpack.c.l.b16 %v998
          %v1405 = vunpack.c.h.b16 %v998
          %v1406 = vunpack.c.l.b16 %v999
          %v1407 = vunpack.c.l.b16 %v1000
          %v1408 = vunpack.c.h.b16 %v1000
          %v1409 = vunpack.c.l.b16 %v1001
          %v1410 = vunpack.c.l.b16 %v1002
          %v1411 = vunpack.c.h.b16 %v1002
          %v1412 = vunpack.c.l.b16 %v1003
          %v1413 = vunpack.c.l.b16 %v1004
          %v1414 = vunpack.c.h.b16 %v1004
          %v1415 = vunpack.c.l.b16 %v1005
          %v1416 = vunpack.c.l.b16 %v1006
          %v1417 = vunpack.c.h.b16 %v1006
          %v1418 = vunpack.c.l.b16 %v1007
          %v1419 = vunpack.c.l.b16 %v1008
          %v1420 = vunpack.c.h.b16 %v1008
          %v1421 = vunpack.c.l.b16 %v1009
          %v1422 = vunpack.c.l.b16 %v1010
          %v1423 = vunpack.c.h.b16 %v1010
          %v1424 = vunpack.c.l.b16 %v1011
          %v1425 = vunpack.c.l.b16 %v1012
          %v1426 = vunpack.c.h.b16 %v1012
          %v1427 = vunpack.c.l.b16 %v1013
          %v1428 = vunpack.c.l.b16 %v1014
          %v1429 = vunpack.c.h.b16 %v1014
          %v1430 = vunpack.c.l.b16 %v1015
          %v1431 = vunpack.c.l.b16 %v1016
          %v1432 = vunpack.c.h.b16 %v1016
          %v1433 = vunpack.c.l.b16 %v1017
          %v1434 = vunpack.c.l.b16 %v1018
          %v1435 = vunpack.c.h.b16 %v1018
          %v1436 = vunpack.c.l.b16 %v1019
          %v1437 = vunpack.c.l.b16 %v1020
          %v1438 = vunpack.c.h.b16 %v1020
          %v1439 = vunpack.c.l.b16 %v1021
          %v1440 = vunpack.c.l.b16 %v1022
          %v1441 = vunpack.c.h.b16 %v1022
          %v1442 = vunpack.c.l.b16 %v1023
          %v1443 = vunpack.c.l.b16 %v1024
          %v1444 = vunpack.c.h.b16 %v1024
          %v1445 = vunpack.c.l.b16 %v1025
          %v1446 = vunpack.c.l.b16 %v1026
          %v1447 = vunpack.c.h.b16 %v1026
          %v1448 = vunpack.c.l.b16 %v1027
          %v1449 = vunpack.c.l.b16 %v1028
          %v1450 = vunpack.c.h.b16 %v1028
          %v1451 = vunpack.c.l.b16 %v1029
          %v1452 = vunpack.c.l.b16 %v1030
          %v1453 = vunpack.c.h.b16 %v1030
          %v1454 = vunpack.c.l.b16 %v1031
          %v1455 = vunpack.c.l.b16 %v1032
          %v1456 = vunpack.c.h.b16 %v1032
          %v1457 = vunpack.c.l.b16 %v1033
          %v1458 = vunpack.c.l.b16 %v1034
          %v1459 = vunpack.c.h.b16 %v1034
          %v1460 = vunpack.c.l.b16 %v1035
          %v1461 = vunpack.c.l.b16 %v1036
          %v1462 = vunpack.c.h.b16 %v1036
          %v1463 = vunpack.c.l.b16 %v1037
          %v1464 = vunpack.c.l.b16 %v1038
          %v1465 = vunpack.c.h.b16 %v1038
          %v1466 = vunpack.c.l.b16 %v1039
          %v1467 = vunpack.c.l.b16 %v1040
          %v1468 = vunpack.c.h.b16 %v1040
          %v1469 = vunpack.c.l.b16 %v1041
          %v1470 = vunpack.c.l.b16 %v1042
          %v1471 = vunpack.c.h.b16 %v1042
          %v1472 = vunpack.c.l.b16 %v1043
          %v1473 = vunpack.c.l.b16 %v1044
          %v1474 = vunpack.c.h.b16 %v1044
          %v1475 = vunpack.c.l.b16 %v1045
          %v1476 = vunpack.c.l.b16 %v1046
          %v1477 = vunpack.c.h.b16 %v1046
          %v1478 = vunpack.c.l.b16 %v1047
          %v1479 = vunpack.c.l.b16 %v1048
          %v1480 = vunpack.c.h.b16 %v1048
          %v1481 = vunpack.c.l.b16 %v1049
          %v1482 = vunpack.c.l.b16 %v1050
          %v1483 = vunpack.c.h.b16 %v1050
          %v1484 = vunpack.c.l.b16 %v1051
          %v1485 = vunpack.c.l.b16 %v1052
          %v1486 = vunpack.c.h.b16 %v1052
          %v1487 = vunpack.c.l.b16 %v1053
          %v1488 = vunpack.c.l.b16 %v1054
          %v1489 = vunpack.c.h.b16 %v1054
          %v1490 = vunpack.c.l.b16 %v1055
          %v1491 = vunpack.c.l.b16 %v1056
          %v1492 = vunpack.c.h.b16 %v1056
          %v1493 = vunpack.c.l.b16 %v1057
          %v1494 = vunpack.c.l.b16 %v1058
          %v1495 = vunpack.c.h.b16 %v1058
          %v1496 = vunpack.c.l.b16 %v1059
          %v1497 = vunpack.c.l.b16 %v1060
          %v1498 = vunpack.c.h.b16 %v1060
          %v1499 = vunpack.c.l.b16 %v1061
          %v1500 = vunpack.c.l.b16 %v1062
          %v1501 = vunpack.c.h.b16 %v1062
          %v1502 = vunpack.c.l.b16 %v1063
          %v1503 = vunpack.c.l.b16 %v1064
          %v1504 = vunpack.c.h.b16 %v1064
          %v1505 = vunpack.c.l.b16 %v1065
          %v1506 = vunpack.c.l.b16 %v1066
          %v1507 = vunpack.c.h.b16 %v1066
          %v1508 = vunpack.c.l.b16 %v1067
          %v1509 = vpack.c.b16 %v1377, %v1374
          %v1510 = vpack.c.b16 %v1378, %v1375
          %v1511 = vpack.c.b16 %v1379, %v1376
          %v1512 = vpack.c.b16 %v1383, %v1380
          %v1513 = vpack.c.b16 %v1384, %v1381
          %v1514 = vpack.c.b16 %v1385, %v1382
          %v1515 = vpack.c.b16 %v1389, %v1386
          %v1516 = vpack.c.b16 %v1390, %v1387
          %v1517 = vpack.c.b16 %v1391, %v1388
          %v1518 = vpack.c.b16 %v1395, %v1392
          %v1519 = vpack.c.b16 %v1396, %v1393
          %v1520 = vpack.c.b16 %v1397, %v1394
          %v1521 = vpack.c.b16 %v1401, %v1398
          %v1522 = vpack.c.b16 %v1402, %v1399
          %v1523 = vpack.c.b16 %v1403, %v1400
          %v1524 = vpack.c.b16 %v1407, %v1404
          %v1525 = vpack.c.b16 %v1408, %v1405
          %v1526 = vpack.c.b16 %v1409, %v1406
          %v1527 = vpack.c.b16 %v1413, %v1410
          %v1528 = vpack.c.b16 %v1414, %v1411
          %v1529 = vpack.c.b16 %v1415, %v1412
          %v1530 = vpack.c.b16 %v1419, %v1416
          %v1531 = vpack.c.b16 %v1420, %v1417
          %v1532 = vpack.c.b16 %v1421, %v1418
          %v1533 = vpack.c.b16 %v1425, %v1422
          %v1534 = vpack.c.b16 %v1426, %v1423
          %v1535 = vpack.c.b16 %v1427, %v1424
          %v1536 = vpack.c.b16 %v1431, %v1428
          %v1537 = vpack.c.b16 %v1432, %v1429
          %v1538 = vpack.c.b16 %v1433, %v1430
          %v1539 = vpack.c.b16 %v1437, %v1434
          %v1540 = vpack.c.b16 %v1438, %v1435
          %v1541 = vpack.c.b16 %v1439, %v1436
          %v1542 = vpack.c.b16 %v1443, %v1440
          %v1543 = vpack.c.b16 %v1444, %v1441
          %v1544 = vpack.c.b16 %v1445, %v1442
          %v1545 = vpack.c.b16 %v1449, %v1446
          %v1546 = vpack.c.b16 %v1450, %v1447
          %v1547 = vpack.c.b16 %v1451, %v1448
          %v1548 = vpack.c.b16 %v1455, %v1452
          %v1549 = vpack.c.b16 %v1456, %v1453
          %v1550 = vpack.c.b16 %v1457, %v1454
          %v1551 = vpack.c.b16 %v1461, %v1458
          %v1552 = vpack.c.b16 %v1462, %v1459
          %v1553 = vpack.c.b16 %v1463, %v1460
          %v1554 = vpack.c.b16 %v1467, %v1464
          %v1555 = vpack.c.b16 %v1468, %v1465
          %v1556 = vpack.c.b16 %v1469, %v1466
          %v1557 = vpack.c.b16 %v1473, %v1470
          %v1558 = vpack.c.b16 %v1474, %v1471
          %v1559 = vpack.c.b16 %v1475, %v1472
          %v1560 = vpack.c.b16 %v1479, %v1476
          %v1561 = vpack.c.b16 %v1480, %v1477
          %v1562 = vpack.c.b16 %v1481, %v1478
          %v1563 = vpack.c.b16 %v1485, %v1482
          %v1564 = vpack.c.b16 %v1486, %v1483
          %v1565 = vpack.c.b16 %v1487, %v1484
          %v1566 = vpack.c.b16 %v1491, %v1488
          %v1567 = vpack.c.b16 %v1492, %v1489
          %v1568 = vpack.c.b16 %v1493, %v1490
          %v1569 = vpack.c.b16 %v1497, %v1494
          %v1570 = vpack.c.b16 %v1498, %v1495
          %v1571 = vpack.c.b16 %v1499, %v1496
          %v1572 = vpack.c.b16 %v1503, %v1500
          %v1573 = vpack.c.b16 %v1504, %v1501
          %v1574 = vpack.c.b16 %v1505, %v1502
          %v1575 = vpack.c.b16 %v1506, %v1506
          %v1576 = vpack.c.b16 %v1507, %v1507
          %v1577 = vpack.c.b16 %v1508, %v1508
          %vm1644 = vcmask 850944
          %v1646 = vsel %vm1644, %v1246, 0
          %v1649 = vsel %vm1644, %v1249, 0
          %v1652 = vsel %vm1644, %v1252, 0
          %v1655 = vsel %vm1644, %v1255, 0
          %v1658 = vsel %vm1644, %v1258, 0
          %v1661 = vsel %vm1644, %v1261, 0
          %v1664 = vsel %vm1644, %v1264, 0
          %v1667 = vsel %vm1644, %v1267, 0
          %v1670 = vsel %vm198, %v1575, 0
          %v1673 = vsel %vm198, %v1576, 0
          %v1676 = vsel %vm198, %v1577, 0
          %1678 = vmatprep.subr.bf16.mxu0 %v1531
          %1679 = vmatpush1.bf16.msra.mxu0 %v1530
          %1680 = vmatprep.subr.bf16.mxu0 %v1528
          %1681 = vmatpush1.bf16.msra.mxu0 %v1527
          %1682 = vmatprep.subr.bf16.mxu0 %v1525
          %1683 = vmatpush1.bf16.msra.mxu0 %v1524
          %1684 = vmatprep.subr.bf16.mxu0 %v1522
          %1685 = vmatpush1.bf16.msra.mxu0 %v1521
          %1686 = vmatprep.subr.bf16.mxu0 %v1519
          %1687 = vmatpush1.bf16.msra.mxu0 %v1518
          %1688 = vmatprep.subr.bf16.mxu0 %v1516
          %1689 = vmatpush1.bf16.msra.mxu0 %v1515
          %1690 = vmatprep.subr.bf16.mxu0 %v1513
          %1691 = vmatpush1.bf16.msra.mxu0 %v1512
          %1692 = vmatprep.subr.bf16.mxu0 %v1510
          %1693 = vmatpush1.bf16.msra.mxu0 %v1509
          %1694 = vmatprep.subr.bf16.mxu0 %v1555
          %1695 = vmatpush2.bf16.msra.mxu0 %v1554
          %1696 = vmatprep.subr.bf16.mxu0 %v1552
          %1697 = vmatpush2.bf16.msra.mxu0 %v1551
          %1698 = vmatprep.subr.bf16.mxu0 %v1549
          %1699 = vmatpush2.bf16.msra.mxu0 %v1548
          %1700 = vmatprep.subr.bf16.mxu0 %v1546
          %1701 = vmatpush2.bf16.msra.mxu0 %v1545
          %1702 = vmatprep.subr.bf16.mxu0 %v1543
          %1703 = vmatpush2.bf16.msra.mxu0 %v1542
          %1704 = vmatprep.subr.bf16.mxu0 %v1540
          %1705 = vmatpush2.bf16.msra.mxu0 %v1539
          %1706 = vmatprep.subr.bf16.mxu0 %v1537
          %1707 = vmatpush2.bf16.msra.mxu0 %v1536
          %1708 = vmatprep.subr.bf16.mxu0 %v1534
          %1709 = vmatpush2.bf16.msra.mxu0 %v1533
          %1710 = vmatprep.mubr.bf16.mxu0 %v1245
          %1711 = vmatmul.mubr.bf16.gmra.mxu0 %v1244
          %v1712 = vpop.f32.mrf.mxu0
          %v1713 = vadd.f32 %v1087, %v1712
          %v1714 = vpop.f32.mrf.mxu0
          %v1715 = vadd.f32 %v1087, %v1714
          %v1716 = vpop.f32.mrf.mxu0
          %v1717 = vadd.f32 %v1092, %v1716
          %v1718 = vpop.f32.mrf.mxu0
          %v1719 = vadd.f32 %v1092, %v1718
          %1720 = vmatprep.mubr.bf16.mxu0 %v1248
          %1721 = vmatmul.mubr.bf16.gmra.mxu0 %v1247
          %v1722 = vpop.f32.mrf.mxu0
          %v1723 = vadd.f32 %v1097, %v1722
          %v1724 = vpop.f32.mrf.mxu0
          %v1725 = vadd.f32 %v1097, %v1724
          %v1726 = vpop.f32.mrf.mxu0
          %v1727 = vadd.f32 %v1102, %v1726
          %v1728 = vpop.f32.mrf.mxu0
          %v1729 = vadd.f32 %v1102, %v1728
          %1730 = vmatprep.mubr.bf16.mxu0 %v1251
          %1731 = vmatmul.mubr.bf16.gmra.mxu0 %v1250
          %v1732 = vpop.f32.mrf.mxu0
          %v1733 = vadd.f32 %v1107, %v1732
          %v1734 = vpop.f32.mrf.mxu0
          %v1735 = vadd.f32 %v1107, %v1734
          %v1736 = vpop.f32.mrf.mxu0
          %v1737 = vadd.f32 %v1112, %v1736
          %v1738 = vpop.f32.mrf.mxu0
          %v1739 = vadd.f32 %v1112, %v1738
          %1740 = vmatprep.mubr.bf16.mxu0 %v1254
          %1741 = vmatmul.mubr.bf16.gmra.mxu0 %v1253
          %v1742 = vpop.f32.mrf.mxu0
          %v1743 = vadd.f32 %v1117, %v1742
          %v1744 = vpop.f32.mrf.mxu0
          %v1745 = vadd.f32 %v1117, %v1744
          %v1746 = vpop.f32.mrf.mxu0
          %v1747 = vadd.f32 %v1122, %v1746
          %v1748 = vpop.f32.mrf.mxu0
          %v1749 = vadd.f32 %v1122, %v1748
          %1750 = vmatprep.mubr.bf16.mxu0 %v1257
          %1751 = vmatmul.mubr.bf16.gmra.mxu0 %v1256
          %v1752 = vpop.f32.mrf.mxu0
          %v1753 = vadd.f32 %v1127, %v1752
          %v1754 = vpop.f32.mrf.mxu0
          %v1755 = vadd.f32 %v1127, %v1754
          %v1756 = vpop.f32.mrf.mxu0
          %v1757 = vadd.f32 %v1132, %v1756
          %v1758 = vpop.f32.mrf.mxu0
          %v1759 = vadd.f32 %v1132, %v1758
          %1760 = vmatprep.mubr.bf16.mxu0 %v1260
          %1761 = vmatmul.mubr.bf16.gmra.mxu0 %v1259
          %v1762 = vpop.f32.mrf.mxu0
          %v1763 = vadd.f32 %v1137, %v1762
          %v1764 = vpop.f32.mrf.mxu0
          %v1765 = vadd.f32 %v1137, %v1764
          %v1766 = vpop.f32.mrf.mxu0
          %v1767 = vadd.f32 %v1142, %v1766
          %v1768 = vpop.f32.mrf.mxu0
          %v1769 = vadd.f32 %v1142, %v1768
          %1770 = vmatprep.mubr.bf16.mxu0 %v1263
          %1771 = vmatmul.mubr.bf16.gmra.mxu0 %v1262
          %v1772 = vpop.f32.mrf.mxu0
          %v1773 = vadd.f32 %v1147, %v1772
          %v1774 = vpop.f32.mrf.mxu0
          %v1775 = vadd.f32 %v1147, %v1774
          %v1776 = vpop.f32.mrf.mxu0
          %v1777 = vadd.f32 %v1152, %v1776
          %v1778 = vpop.f32.mrf.mxu0
          %v1779 = vadd.f32 %v1152, %v1778
          %1780 = vmatprep.mubr.bf16.mxu0 %v1266
          %1781 = vmatmul.mubr.bf16.gmra.mxu0 %v1265
          %v1782 = vpop.f32.mrf.mxu0
          %v1783 = vadd.f32 %v1157, %v1782
          %v1784 = vpop.f32.mrf.mxu0
          %v1785 = vadd.f32 %v1157, %v1784
          %v1786 = vpop.f32.mrf.mxu0
          %v1787 = vadd.f32 %v1162, %v1786
          %v1788 = vpop.f32.mrf.mxu0
          %v1789 = vadd.f32 %v1162, %v1788
          %1790 = vdwg.mxu0
          %1791 = vmatprep.subr.bf16.mxu0 0
          %1792 = vmatpush1.bf16.msra.mxu0 0
          %1793 = vmatprep.subr.bf16.mxu0 %v1673
          %1794 = vmatpush1.bf16.msra.mxu0 %v1670
          %1795 = vmatprep.subr.bf16.mxu0 %v1573
          %1796 = vmatpush1.bf16.msra.mxu0 %v1572
          %1797 = vmatprep.subr.bf16.mxu0 %v1570
          %1798 = vmatpush1.bf16.msra.mxu0 %v1569
          %1799 = vmatprep.subr.bf16.mxu0 %v1567
          %1800 = vmatpush1.bf16.msra.mxu0 %v1566
          %1801 = vmatprep.subr.bf16.mxu0 %v1564
          %1802 = vmatpush1.bf16.msra.mxu0 %v1563
          %1803 = vmatprep.subr.bf16.mxu0 %v1561
          %1804 = vmatpush1.bf16.msra.mxu0 %v1560
          %1805 = vmatprep.subr.bf16.mxu0 %v1558
          %1806 = vmatpush1.bf16.msra.mxu0 %v1557
          %1807 = vmatprep.subr.bf16.mxu0 0
          %1808 = vmatpush2.bf16.msra.mxu0 0
          %1809 = vmatprep.subr.bf16.mxu0 0
          %1810 = vmatpush2.bf16.msra.mxu0 0
          %1811 = vmatprep.subr.bf16.mxu0 0
          %1812 = vmatpush2.bf16.msra.mxu0 0
          %1813 = vmatprep.subr.bf16.mxu0 0
          %1814 = vmatpush2.bf16.msra.mxu0 0
          %1815 = vmatprep.subr.bf16.mxu0 0
          %1816 = vmatpush2.bf16.msra.mxu0 0
          %1817 = vmatprep.subr.bf16.mxu0 0
          %1818 = vmatpush2.bf16.msra.mxu0 0
          %1819 = vmatprep.subr.bf16.mxu0 0
          %1820 = vmatpush2.bf16.msra.mxu0 0
          %1821 = vmatprep.subr.bf16.mxu0 0
          %1822 = vmatpush2.bf16.msra.mxu0 0
          %1823 = vmatprep.mubr.bf16.mxu0 0
          %1824 = vmatmul.mubr.bf16.gmra.mxu0 %v1646
          %v1825 = vpop.f32.mrf.mxu0
          %v1826 = vadd.f32 %v1713, %v1825
          %v1827 = vpop.f32.mrf.mxu0
          %v1828 = vadd.f32 %v1715, %v1827
          %v1829 = vpop.f32.mrf.mxu0
          %v1830 = vadd.f32 %v1717, %v1829
          %v1831 = vpop.f32.mrf.mxu0
          %v1832 = vadd.f32 %v1719, %v1831
          %1833 = vmatprep.mubr.bf16.mxu0 0
          %1834 = vmatmul.mubr.bf16.gmra.mxu0 %v1649
          %v1835 = vpop.f32.mrf.mxu0
          %v1836 = vadd.f32 %v1723, %v1835
          %v1837 = vpop.f32.mrf.mxu0
          %v1838 = vadd.f32 %v1725, %v1837
          %v1839 = vpop.f32.mrf.mxu0
          %v1840 = vadd.f32 %v1727, %v1839
          %v1841 = vpop.f32.mrf.mxu0
          %v1842 = vadd.f32 %v1729, %v1841
          %1843 = vmatprep.mubr.bf16.mxu0 0
          %1844 = vmatmul.mubr.bf16.gmra.mxu0 %v1652
          %v1845 = vpop.f32.mrf.mxu0
          %v1846 = vadd.f32 %v1733, %v1845
          %v1847 = vpop.f32.mrf.mxu0
          %v1848 = vadd.f32 %v1735, %v1847
          %v1849 = vpop.f32.mrf.mxu0
          %v1850 = vadd.f32 %v1737, %v1849
          %v1851 = vpop.f32.mrf.mxu0
          %v1852 = vadd.f32 %v1739, %v1851
          %1853 = vmatprep.mubr.bf16.mxu0 0
          %1854 = vmatmul.mubr.bf16.gmra.mxu0 %v1655
          %v1855 = vpop.f32.mrf.mxu0
          %v1856 = vadd.f32 %v1743, %v1855
          %v1857 = vpop.f32.mrf.mxu0
          %v1858 = vadd.f32 %v1745, %v1857
          %v1859 = vpop.f32.mrf.mxu0
          %v1860 = vadd.f32 %v1747, %v1859
          %v1861 = vpop.f32.mrf.mxu0
          %v1862 = vadd.f32 %v1749, %v1861
          %1863 = vmatprep.mubr.bf16.mxu0 0
          %1864 = vmatmul.mubr.bf16.gmra.mxu0 %v1658
          %v1865 = vpop.f32.mrf.mxu0
          %v1866 = vadd.f32 %v1753, %v1865
          %v1867 = vpop.f32.mrf.mxu0
          %v1868 = vadd.f32 %v1755, %v1867
          %v1869 = vpop.f32.mrf.mxu0
          %v1870 = vadd.f32 %v1757, %v1869
          %v1871 = vpop.f32.mrf.mxu0
          %v1872 = vadd.f32 %v1759, %v1871
          %1873 = vmatprep.mubr.bf16.mxu0 0
          %1874 = vmatmul.mubr.bf16.gmra.mxu0 %v1661
          %v1875 = vpop.f32.mrf.mxu0
          %v1876 = vadd.f32 %v1763, %v1875
          %v1877 = vpop.f32.mrf.mxu0
          %v1878 = vadd.f32 %v1765, %v1877
          %v1879 = vpop.f32.mrf.mxu0
          %v1880 = vadd.f32 %v1767, %v1879
          %v1881 = vpop.f32.mrf.mxu0
          %v1882 = vadd.f32 %v1769, %v1881
          %1883 = vmatprep.mubr.bf16.mxu0 0
          %1884 = vmatmul.mubr.bf16.gmra.mxu0 %v1664
          %v1885 = vpop.f32.mrf.mxu0
          %v1886 = vadd.f32 %v1773, %v1885
          %v1887 = vpop.f32.mrf.mxu0
          %v1888 = vadd.f32 %v1775, %v1887
          %v1889 = vpop.f32.mrf.mxu0
          %v1890 = vadd.f32 %v1777, %v1889
          %v1891 = vpop.f32.mrf.mxu0
          %v1892 = vadd.f32 %v1779, %v1891
          %1893 = vmatprep.mubr.bf16.mxu0 0
          %1894 = vmatmul.mubr.bf16.gmra.mxu0 %v1667
          %v1895 = vpop.f32.mrf.mxu0
          %v1896 = vadd.f32 %v1783, %v1895
          %v1897 = vpop.f32.mrf.mxu0
          %v1898 = vadd.f32 %v1785, %v1897
          %v1899 = vpop.f32.mrf.mxu0
          %v1900 = vadd.f32 %v1787, %v1899
          %v1901 = vpop.f32.mrf.mxu0
          %v1902 = vadd.f32 %v1789, %v1901
          %1903 = vdwg.mxu0
          %1904 = vmatprep.subr.bf16.mxu0 0
          %1905 = vmatpush1.bf16.msra.mxu0 %v1532
          %1906 = vmatprep.subr.bf16.mxu0 0
          %1907 = vmatpush1.bf16.msra.mxu0 %v1529
          %1908 = vmatprep.subr.bf16.mxu0 0
          %1909 = vmatpush1.bf16.msra.mxu0 %v1526
          %1910 = vmatprep.subr.bf16.mxu0 0
          %1911 = vmatpush1.bf16.msra.mxu0 %v1523
          %1912 = vmatprep.subr.bf16.mxu0 0
          %1913 = vmatpush1.bf16.msra.mxu0 %v1520
          %1914 = vmatprep.subr.bf16.mxu0 0
          %1915 = vmatpush1.bf16.msra.mxu0 %v1517
          %1916 = vmatprep.subr.bf16.mxu0 0
          %1917 = vmatpush1.bf16.msra.mxu0 %v1514
          %1918 = vmatprep.subr.bf16.mxu0 0
          %1919 = vmatpush1.bf16.msra.mxu0 %v1511
          %1920 = vmatprep.subr.bf16.mxu0 0
          %1921 = vmatpush2.bf16.msra.mxu0 %v1556
          %1922 = vmatprep.subr.bf16.mxu0 0
          %1923 = vmatpush2.bf16.msra.mxu0 %v1553
          %1924 = vmatprep.subr.bf16.mxu0 0
          %1925 = vmatpush2.bf16.msra.mxu0 %v1550
          %1926 = vmatprep.subr.bf16.mxu0 0
          %1927 = vmatpush2.bf16.msra.mxu0 %v1547
          %1928 = vmatprep.subr.bf16.mxu0 0
          %1929 = vmatpush2.bf16.msra.mxu0 %v1544
          %1930 = vmatprep.subr.bf16.mxu0 0
          %1931 = vmatpush2.bf16.msra.mxu0 %v1541
          %1932 = vmatprep.subr.bf16.mxu0 0
          %1933 = vmatpush2.bf16.msra.mxu0 %v1538
          %1934 = vmatprep.subr.bf16.mxu0 0
          %1935 = vmatpush2.bf16.msra.mxu0 %v1535
          %1936 = vmatprep.mubr.bf16.mxu0 %v1245
          %1937 = vmatmul.mubr.bf16.gmra.mxu0 %v1244
          %v1938 = vpop.f32.mrf.mxu0
          %v1939 = vadd.f32 %v1087, %v1938
          %v1940 = vpop.f32.mrf.mxu0
          %v1941 = vpop.f32.mrf.mxu0
          %v1942 = vadd.f32 %v1092, %v1941
          %v1943 = vpop.f32.mrf.mxu0
          %1944 = vmatprep.mubr.bf16.mxu0 %v1248
          %1945 = vmatmul.mubr.bf16.gmra.mxu0 %v1247
          %v1946 = vpop.f32.mrf.mxu0
          %v1947 = vadd.f32 %v1097, %v1946
          %v1948 = vpop.f32.mrf.mxu0
          %v1949 = vpop.f32.mrf.mxu0
          %v1950 = vadd.f32 %v1102, %v1949
          %v1951 = vpop.f32.mrf.mxu0
          %1952 = vmatprep.mubr.bf16.mxu0 %v1251
          %1953 = vmatmul.mubr.bf16.gmra.mxu0 %v1250
          %v1954 = vpop.f32.mrf.mxu0
          %v1955 = vadd.f32 %v1107, %v1954
          %v1956 = vpop.f32.mrf.mxu0
          %v1957 = vpop.f32.mrf.mxu0
          %v1958 = vadd.f32 %v1112, %v1957
          %v1959 = vpop.f32.mrf.mxu0
          %1960 = vmatprep.mubr.bf16.mxu0 %v1254
          %1961 = vmatmul.mubr.bf16.gmra.mxu0 %v1253
          %v1962 = vpop.f32.mrf.mxu0
          %v1963 = vadd.f32 %v1117, %v1962
          %v1964 = vpop.f32.mrf.mxu0
          %v1965 = vpop.f32.mrf.mxu0
          %v1966 = vadd.f32 %v1122, %v1965
          %v1967 = vpop.f32.mrf.mxu0
          %1968 = vmatprep.mubr.bf16.mxu0 %v1257
          %1969 = vmatmul.mubr.bf16.gmra.mxu0 %v1256
          %v1970 = vpop.f32.mrf.mxu0
          %v1971 = vadd.f32 %v1127, %v1970
          %v1972 = vpop.f32.mrf.mxu0
          %v1973 = vpop.f32.mrf.mxu0
          %v1974 = vadd.f32 %v1132, %v1973
          %v1975 = vpop.f32.mrf.mxu0
          %1976 = vmatprep.mubr.bf16.mxu0 %v1260
          %1977 = vmatmul.mubr.bf16.gmra.mxu0 %v1259
          %v1978 = vpop.f32.mrf.mxu0
          %v1979 = vadd.f32 %v1137, %v1978
          %v1980 = vpop.f32.mrf.mxu0
          %v1981 = vpop.f32.mrf.mxu0
          %v1982 = vadd.f32 %v1142, %v1981
          %v1983 = vpop.f32.mrf.mxu0
          %1984 = vmatprep.mubr.bf16.mxu0 %v1263
          %1985 = vmatmul.mubr.bf16.gmra.mxu0 %v1262
          %v1986 = vpop.f32.mrf.mxu0
          %v1987 = vadd.f32 %v1147, %v1986
          %v1988 = vpop.f32.mrf.mxu0
          %v1989 = vpop.f32.mrf.mxu0
          %v1990 = vadd.f32 %v1152, %v1989
          %v1991 = vpop.f32.mrf.mxu0
          %1992 = vmatprep.mubr.bf16.mxu0 %v1266
          %1993 = vmatmul.mubr.bf16.gmra.mxu0 %v1265
          %v1994 = vpop.f32.mrf.mxu0
          %v1995 = vadd.f32 %v1157, %v1994
          %v1996 = vpop.f32.mrf.mxu0
          %v1997 = vpop.f32.mrf.mxu0
          %v1998 = vadd.f32 %v1162, %v1997
          %v1999 = vpop.f32.mrf.mxu0
          %2000 = vdwg.mxu0
          %2001 = vmatprep.subr.bf16.mxu0 0
          %2002 = vmatpush1.bf16.msra.mxu0 0
          %2003 = vmatprep.subr.bf16.mxu0 0
          %2004 = vmatpush1.bf16.msra.mxu0 %v1676
          %2005 = vmatprep.subr.bf16.mxu0 0
          %2006 = vmatpush1.bf16.msra.mxu0 %v1574
          %2007 = vmatprep.subr.bf16.mxu0 0
          %2008 = vmatpush1.bf16.msra.mxu0 %v1571
          %2009 = vmatprep.subr.bf16.mxu0 0
          %2010 = vmatpush1.bf16.msra.mxu0 %v1568
          %2011 = vmatprep.subr.bf16.mxu0 0
          %2012 = vmatpush1.bf16.msra.mxu0 %v1565
          %2013 = vmatprep.subr.bf16.mxu0 0
          %2014 = vmatpush1.bf16.msra.mxu0 %v1562
          %2015 = vmatprep.subr.bf16.mxu0 0
          %2016 = vmatpush1.bf16.msra.mxu0 %v1559
          %2017 = vmatprep.subr.bf16.mxu0 0
          %2018 = vmatpush2.bf16.msra.mxu0 0
          %2019 = vmatprep.subr.bf16.mxu0 0
          %2020 = vmatpush2.bf16.msra.mxu0 0
          %2021 = vmatprep.subr.bf16.mxu0 0
          %2022 = vmatpush2.bf16.msra.mxu0 0
          %2023 = vmatprep.subr.bf16.mxu0 0
          %2024 = vmatpush2.bf16.msra.mxu0 0
          %2025 = vmatprep.subr.bf16.mxu0 0
          %2026 = vmatpush2.bf16.msra.mxu0 0
          %2027 = vmatprep.subr.bf16.mxu0 0
          %2028 = vmatpush2.bf16.msra.mxu0 0
          %2029 = vmatprep.subr.bf16.mxu0 0
          %2030 = vmatpush2.bf16.msra.mxu0 0
          %2031 = vmatprep.subr.bf16.mxu0 0
          %2032 = vmatpush2.bf16.msra.mxu0 0
          %2033 = vmatprep.mubr.bf16.mxu0 0
          %2034 = vmatmul.mubr.bf16.gmra.mxu0 %v1646
          %v2035 = vpop.f32.mrf.mxu0
          %v2036 = vadd.f32 %v1939, %v2035
          %v2037 = vpop.f32.mrf.mxu0
          %v2038 = vpop.f32.mrf.mxu0
          %v2039 = vadd.f32 %v1942, %v2038
          %v2040 = vpop.f32.mrf.mxu0
          %2041 = vmatprep.mubr.bf16.mxu0 0
          %2042 = vmatmul.mubr.bf16.gmra.mxu0 %v1649
          %v2043 = vpop.f32.mrf.mxu0
          %v2044 = vadd.f32 %v1947, %v2043
          %v2045 = vpop.f32.mrf.mxu0
          %v2046 = vpop.f32.mrf.mxu0
          %v2047 = vadd.f32 %v1950, %v2046
          %v2048 = vpop.f32.mrf.mxu0
          %2049 = vmatprep.mubr.bf16.mxu0 0
          %2050 = vmatmul.mubr.bf16.gmra.mxu0 %v1652
          %v2051 = vpop.f32.mrf.mxu0
          %v2052 = vadd.f32 %v1955, %v2051
          %v2053 = vpop.f32.mrf.mxu0
          %v2054 = vpop.f32.mrf.mxu0
          %v2055 = vadd.f32 %v1958, %v2054
          %v2056 = vpop.f32.mrf.mxu0
          %2057 = vmatprep.mubr.bf16.mxu0 0
          %2058 = vmatmul.mubr.bf16.gmra.mxu0 %v1655
          %v2059 = vpop.f32.mrf.mxu0
          %v2060 = vadd.f32 %v1963, %v2059
          %v2061 = vpop.f32.mrf.mxu0
          %v2062 = vpop.f32.mrf.mxu0
          %v2063 = vadd.f32 %v1966, %v2062
          %v2064 = vpop.f32.mrf.mxu0
          %2065 = vmatprep.mubr.bf16.mxu0 0
          %2066 = vmatmul.mubr.bf16.gmra.mxu0 %v1658
          %v2067 = vpop.f32.mrf.mxu0
          %v2068 = vadd.f32 %v1971, %v2067
          %v2069 = vpop.f32.mrf.mxu0
          %v2070 = vpop.f32.mrf.mxu0
          %v2071 = vadd.f32 %v1974, %v2070
          %v2072 = vpop.f32.mrf.mxu0
          %2073 = vmatprep.mubr.bf16.mxu0 0
          %2074 = vmatmul.mubr.bf16.gmra.mxu0 %v1661
          %v2075 = vpop.f32.mrf.mxu0
          %v2076 = vadd.f32 %v1979, %v2075
          %v2077 = vpop.f32.mrf.mxu0
          %v2078 = vpop.f32.mrf.mxu0
          %v2079 = vadd.f32 %v1982, %v2078
          %v2080 = vpop.f32.mrf.mxu0
          %2081 = vmatprep.mubr.bf16.mxu0 0
          %2082 = vmatmul.mubr.bf16.gmra.mxu0 %v1664
          %v2083 = vpop.f32.mrf.mxu0
          %v2084 = vadd.f32 %v1987, %v2083
          %v2085 = vpop.f32.mrf.mxu0
          %v2086 = vpop.f32.mrf.mxu0
          %v2087 = vadd.f32 %v1990, %v2086
          %v2088 = vpop.f32.mrf.mxu0
          %2089 = vmatprep.mubr.bf16.mxu0 0
          %2090 = vmatmul.mubr.bf16.gmra.mxu0 %v1667
          %v2091 = vpop.f32.mrf.mxu0
          %v2092 = vadd.f32 %v1995, %v2091
          %v2093 = vpop.f32.mrf.mxu0
          %v2094 = vpop.f32.mrf.mxu0
          %v2095 = vadd.f32 %v1998, %v2094
          %v2096 = vpop.f32.mrf.mxu0
          %2097 = vdwg.mxu0
          %v2098 = vmul.f32 %v1826, 0.5
          %v2099 = vmul.f32 %v1828, 0.5
          %v2100 = vmul.f32 %v2036, 0.5
          %v2101 = vmul.f32 %v1830, 0.5
          %v2102 = vmul.f32 %v1832, 0.5
          %v2103 = vmul.f32 %v2039, 0.5
          %v2104 = vmul.f32 %v1836, 0.5
          %v2105 = vmul.f32 %v1838, 0.5
          %v2106 = vmul.f32 %v2044, 0.5
          %v2107 = vmul.f32 %v1840, 0.5
          %v2108 = vmul.f32 %v1842, 0.5
          %v2109 = vmul.f32 %v2047, 0.5
          %v2110 = vtanh.pop %v2098
          %v2111 = vtanh.pop %v2099
          %v2112 = vtanh.pop %v2100
          %v2113 = vtanh.pop %v2101
          %v2114 = vtanh.pop %v2102
          %v2115 = vtanh.pop %v2103
          %v2116 = vtanh.pop %v2104
          %v2117 = vtanh.pop %v2105
          %v2118 = vtanh.pop %v2106
          %v2119 = vtanh.pop %v2107
          %v2120 = vtanh.pop %v2108
          %v2121 = vtanh.pop %v2109
          %v2122 = vmul.f32 %v2110, 0.5
          %v2123 = vmul.f32 %v2111, 0.5
          %v2124 = vmul.f32 %v2112, 0.5
          %v2125 = vmul.f32 %v2113, 0.5
          %v2126 = vmul.f32 %v2114, 0.5
          %v2127 = vmul.f32 %v2115, 0.5
          %v2128 = vmul.f32 %v2116, 0.5
          %v2129 = vmul.f32 %v2117, 0.5
          %v2130 = vmul.f32 %v2118, 0.5
          %v2131 = vmul.f32 %v2119, 0.5
          %v2132 = vmul.f32 %v2120, 0.5
          %v2133 = vmul.f32 %v2121, 0.5
          %v2134 = vadd.f32 %v2122, 0.5
          %v2135 = vadd.f32 %v2123, 0.5
          %v2136 = vadd.f32 %v2124, 0.5
          %v2137 = vadd.f32 %v2125, 0.5
          %v2138 = vadd.f32 %v2126, 0.5
          %v2139 = vadd.f32 %v2127, 0.5
          %v2140 = vadd.f32 %v2128, 0.5
          %v2141 = vadd.f32 %v2129, 0.5
          %v2142 = vadd.f32 %v2130, 0.5
          %v2143 = vadd.f32 %v2131, 0.5
          %v2144 = vadd.f32 %v2132, 0.5
          %v2145 = vadd.f32 %v2133, 0.5
          %v2146 = vmul.f32 %v1846, 0.5
          %v2147 = vmul.f32 %v1848, 0.5
          %v2148 = vmul.f32 %v2052, 0.5
          %v2149 = vmul.f32 %v1850, 0.5
          %v2150 = vmul.f32 %v1852, 0.5
          %v2151 = vmul.f32 %v2055, 0.5
          %v2152 = vmul.f32 %v1856, 0.5
          %v2153 = vmul.f32 %v1858, 0.5
          %v2154 = vmul.f32 %v2060, 0.5
          %v2155 = vmul.f32 %v1860, 0.5
          %v2156 = vmul.f32 %v1862, 0.5
          %v2157 = vmul.f32 %v2063, 0.5
          %v2158 = vtanh.pop %v2146
          %v2159 = vtanh.pop %v2147
          %v2160 = vtanh.pop %v2148
          %v2161 = vtanh.pop %v2149
          %v2162 = vtanh.pop %v2150
          %v2163 = vtanh.pop %v2151
          %v2164 = vtanh.pop %v2152
          %v2165 = vtanh.pop %v2153
          %v2166 = vtanh.pop %v2154
          %v2167 = vtanh.pop %v2155
          %v2168 = vtanh.pop %v2156
          %v2169 = vtanh.pop %v2157
          %v2170 = vmul.f32 %v2158, 0.5
          %v2171 = vmul.f32 %v2159, 0.5
          %v2172 = vmul.f32 %v2160, 0.5
          %v2173 = vmul.f32 %v2161, 0.5
          %v2174 = vmul.f32 %v2162, 0.5
          %v2175 = vmul.f32 %v2163, 0.5
          %v2176 = vmul.f32 %v2164, 0.5
          %v2177 = vmul.f32 %v2165, 0.5
          %v2178 = vmul.f32 %v2166, 0.5
          %v2179 = vmul.f32 %v2167, 0.5
          %v2180 = vmul.f32 %v2168, 0.5
          %v2181 = vmul.f32 %v2169, 0.5
          %v2182 = vadd.f32 %v2170, 0.5
          %v2183 = vadd.f32 %v2171, 0.5
          %v2184 = vadd.f32 %v2172, 0.5
          %v2185 = vadd.f32 %v2173, 0.5
          %v2186 = vadd.f32 %v2174, 0.5
          %v2187 = vadd.f32 %v2175, 0.5
          %v2188 = vadd.f32 %v2176, 0.5
          %v2189 = vadd.f32 %v2177, 0.5
          %v2190 = vadd.f32 %v2178, 0.5
          %v2191 = vadd.f32 %v2179, 0.5
          %v2192 = vadd.f32 %v2180, 0.5
          %v2193 = vadd.f32 %v2181, 0.5
          %v2194 = vtanh.pop %v1866
          %v2195 = vtanh.pop %v1868
          %v2196 = vtanh.pop %v2068
          %v2197 = vtanh.pop %v1870
          %v2198 = vtanh.pop %v1872
          %v2199 = vtanh.pop %v2071
          %v2200 = vtanh.pop %v1876
          %v2201 = vtanh.pop %v1878
          %v2202 = vtanh.pop %v2076
          %v2203 = vtanh.pop %v1880
          %v2204 = vtanh.pop %v1882
          %v2205 = vtanh.pop %v2079
          %v2206 = vmul.f32 %v1886, 0.5
          %v2207 = vmul.f32 %v1888, 0.5
          %v2208 = vmul.f32 %v2084, 0.5
          %v2209 = vmul.f32 %v1890, 0.5
          %v2210 = vmul.f32 %v1892, 0.5
          %v2211 = vmul.f32 %v2087, 0.5
          %v2212 = vmul.f32 %v1896, 0.5
          %v2213 = vmul.f32 %v1898, 0.5
          %v2214 = vmul.f32 %v2092, 0.5
          %v2215 = vmul.f32 %v1900, 0.5
          %v2216 = vmul.f32 %v1902, 0.5
          %v2217 = vmul.f32 %v2095, 0.5
          %v2218 = vtanh.pop %v2206
          %v2219 = vtanh.pop %v2207
          %v2220 = vtanh.pop %v2208
          %v2221 = vtanh.pop %v2209
          %v2222 = vtanh.pop %v2210
          %v2223 = vtanh.pop %v2211
          %v2224 = vtanh.pop %v2212
          %v2225 = vtanh.pop %v2213
          %v2226 = vtanh.pop %v2214
          %v2227 = vtanh.pop %v2215
          %v2228 = vtanh.pop %v2216
          %v2229 = vtanh.pop %v2217
          %v2230 = vmul.f32 %v2218, 0.5
          %v2231 = vmul.f32 %v2219, 0.5
          %v2232 = vmul.f32 %v2220, 0.5
          %v2233 = vmul.f32 %v2221, 0.5
          %v2234 = vmul.f32 %v2222, 0.5
          %v2235 = vmul.f32 %v2223, 0.5
          %v2236 = vmul.f32 %v2224, 0.5
          %v2237 = vmul.f32 %v2225, 0.5
          %v2238 = vmul.f32 %v2226, 0.5
          %v2239 = vmul.f32 %v2227, 0.5
          %v2240 = vmul.f32 %v2228, 0.5
          %v2241 = vmul.f32 %v2229, 0.5
          %v2242 = vadd.f32 %v2230, 0.5
          %v2243 = vadd.f32 %v2231, 0.5
          %v2244 = vadd.f32 %v2232, 0.5
          %v2245 = vadd.f32 %v2233, 0.5
          %v2246 = vadd.f32 %v2234, 0.5
          %v2247 = vadd.f32 %v2235, 0.5
          %v2248 = vadd.f32 %v2236, 0.5
          %v2249 = vadd.f32 %v2237, 0.5
          %v2250 = vadd.f32 %v2238, 0.5
          %v2251 = vadd.f32 %v2239, 0.5
          %v2252 = vadd.f32 %v2240, 0.5
          %v2253 = vadd.f32 %v2241, 0.5
          %v2254 = vld [vmem:[#allocation4] sm:$0xff]
          %v2255 = vld [vmem:[#allocation4 + $0x8] sm:$0xff]
          %v2256 = vld [vmem:[#allocation4 + $0x10] sm:$0xff]
          %v2257 = vld [vmem:[#allocation4 + $0x18] sm:$0xff]
          %v2258 = vld [vmem:[#allocation4 + $0x20] sm:$0xff]
          %v2259 = vld [vmem:[#allocation4 + $0x28] sm:$0xff]
          %v2260 = vld [vmem:[#allocation4 + $0x30] sm:$0xff]
          %v2261 = vld [vmem:[#allocation4 + $0x38] sm:$0xff]
          %v2262 = vld [vmem:[#allocation4 + $0x40] sm:$0xff]
          %v2263 = vld [vmem:[#allocation4 + $0x48] sm:$0xff]
          %v2264 = vld [vmem:[#allocation4 + $0x50] sm:$0xff]
          %v2265 = vld [vmem:[#allocation4 + $0x58] sm:$0xff]
          %v2266 = vmul.f32 %v2182, %v2254
          %v2267 = vmul.f32 %v2183, %v2255
          %v2268 = vmul.f32 %v2184, %v2256
          %v2269 = vmul.f32 %v2185, %v2257
          %v2270 = vmul.f32 %v2186, %v2258
          %v2271 = vmul.f32 %v2187, %v2259
          %v2272 = vmul.f32 %v2188, %v2260
          %v2273 = vmul.f32 %v2189, %v2261
          %v2274 = vmul.f32 %v2190, %v2262
          %v2275 = vmul.f32 %v2191, %v2263
          %v2276 = vmul.f32 %v2192, %v2264
          %v2277 = vmul.f32 %v2193, %v2265
          %v2278 = vmul.f32 %v2134, %v2194
          %v2279 = vmul.f32 %v2135, %v2195
          %v2280 = vmul.f32 %v2136, %v2196
          %v2281 = vmul.f32 %v2137, %v2197
          %v2282 = vmul.f32 %v2138, %v2198
          %v2283 = vmul.f32 %v2139, %v2199
          %v2284 = vmul.f32 %v2140, %v2200
          %v2285 = vmul.f32 %v2141, %v2201
          %v2286 = vmul.f32 %v2142, %v2202
          %v2287 = vmul.f32 %v2143, %v2203
          %v2288 = vmul.f32 %v2144, %v2204
          %v2289 = vmul.f32 %v2145, %v2205
          %v2290 = vadd.f32 %v2266, %v2278
          %v2291 = vadd.f32 %v2267, %v2279
          %v2292 = vadd.f32 %v2268, %v2280
          %v2293 = vadd.f32 %v2269, %v2281
          %v2294 = vadd.f32 %v2270, %v2282
          %v2295 = vadd.f32 %v2271, %v2283
          %v2296 = vadd.f32 %v2272, %v2284
          %v2297 = vadd.f32 %v2273, %v2285
          %v2298 = vadd.f32 %v2274, %v2286
          %v2299 = vadd.f32 %v2275, %v2287
          %v2300 = vadd.f32 %v2276, %v2288
          %v2301 = vadd.f32 %v2277, %v2289
          %v2302 = vld [vmem:[%s3] sm:$0x7]
          %v2304 = vlaneseq
          %v2305 = vshrl.u32 %v2304, 7
          %v2306 = vsub.s32 0, %v2305
          %v2307 = vrot.slane %v2302, %v2306
          %v2308 = vlaneseq
          %v2309 = vshrl.u32 %v2308, 7
          %v2310 = vsub.s32 1, %v2309
          %v2311 = vrot.slane %v2302, %v2310
          %v2312 = vlaneseq
          %v2313 = vshrl.u32 %v2312, 7
          %v2314 = vsub.s32 2, %v2313
          %v2315 = vrot.slane %v2302, %v2314
          %v2319 = vmul.f32 %v2290, %v2307
          %v2320 = vmul.f32 %v2291, %v2311
          %v2321 = vmul.f32 %v2292, %v2315
          %v2322 = vmul.f32 %v2293, %v2307
          %v2323 = vmul.f32 %v2294, %v2311
          %v2324 = vmul.f32 %v2295, %v2315
          %v2325 = vmul.f32 %v2296, %v2307
          %v2326 = vmul.f32 %v2297, %v2311
          %v2327 = vmul.f32 %v2298, %v2315
          %v2328 = vmul.f32 %v2299, %v2307
          %v2329 = vmul.f32 %v2300, %v2311
          %v2330 = vmul.f32 %v2301, %v2315
          %v2331 = vtanh.pop %v2319
          %v2332 = vtanh.pop %v2320
          %v2333 = vtanh.pop %v2321
          %v2334 = vtanh.pop %v2322
          %v2335 = vtanh.pop %v2323
          %v2336 = vtanh.pop %v2324
          %v2337 = vtanh.pop %v2325
          %v2338 = vtanh.pop %v2326
          %v2339 = vtanh.pop %v2327
          %v2340 = vtanh.pop %v2328
          %v2341 = vtanh.pop %v2329
          %v2342 = vtanh.pop %v2330
          %v2343 = vmul.f32 %v2242, %v2331
          %v2344 = vmul.f32 %v2243, %v2332
          %v2345 = vmul.f32 %v2244, %v2333
          %v2346 = vmul.f32 %v2245, %v2334
          %v2347 = vmul.f32 %v2246, %v2335
          %v2348 = vmul.f32 %v2247, %v2336
          %v2349 = vmul.f32 %v2248, %v2337
          %v2350 = vmul.f32 %v2249, %v2338
          %v2351 = vmul.f32 %v2250, %v2339
          %v2352 = vmul.f32 %v2251, %v2340
          %v2353 = vmul.f32 %v2252, %v2341
          %v2354 = vmul.f32 %v2253, %v2342
          %2355 = vst [vmem:[#allocation4] sm:$0xff] %v2319
          %2356 = vst [vmem:[#allocation4 + $0x8] sm:$0xff] %v2320
          %2357 = vst.msk [vmem:[#allocation4 + $0x10] sm:$0xff] %vm212, %v2321
          %2358 = vst [vmem:[#allocation4 + $0x18] sm:$0xff] %v2322
          %2359 = vst [vmem:[#allocation4 + $0x20] sm:$0xff] %v2323
          %2360 = vst.msk [vmem:[#allocation4 + $0x28] sm:$0xff] %vm212, %v2324
          %2361 = vst [vmem:[#allocation4 + $0x30] sm:$0xff] %v2325
          %2362 = vst [vmem:[#allocation4 + $0x38] sm:$0xff] %v2326
          %2363 = vst.msk [vmem:[#allocation4 + $0x40] sm:$0xff] %vm212, %v2327
          %2364 = vst [vmem:[#allocation4 + $0x48] sm:$0xff] %v2328
          %2365 = vst [vmem:[#allocation4 + $0x50] sm:$0xff] %v2329
          %2366 = vst.msk [vmem:[#allocation4 + $0x58] sm:$0xff] %vm212, %v2330
          %s2367 = smul.u32 %s224, 12
          %s2368 = smul.addr %s2367, 8
          %s2369 = scalar_lea.vmem %s190, %s2368 [#allocation5]
          %2370 = vst [vmem:[%s2369] sm:$0xff] %v2343
          %2371 = vst [vmem:[%s2369 + $0x8] sm:$0xff] %v2344
          %2372 = vst.msk [vmem:[%s2369 + $0x10] sm:$0xff] %vm212, %v2345
          %2373 = vst [vmem:[%s2369 + $0x18] sm:$0xff] %v2346
          %2374 = vst [vmem:[%s2369 + $0x20] sm:$0xff] %v2347
          %2375 = vst.msk [vmem:[%s2369 + $0x28] sm:$0xff] %vm212, %v2348
          %2376 = vst [vmem:[%s2369 + $0x30] sm:$0xff] %v2349
          %2377 = vst [vmem:[%s2369 + $0x38] sm:$0xff] %v2350
          %2378 = vst.msk [vmem:[%s2369 + $0x40] sm:$0xff] %vm212, %v2351
          %2379 = vst [vmem:[%s2369 + $0x48] sm:$0xff] %v2352
          %2380 = vst [vmem:[%s2369 + $0x50] sm:$0xff] %v2353
          %2381 = vst.msk [vmem:[%s2369 + $0x58] sm:$0xff] %vm212, %v2354
          %v2382 = vpack.c.bf16 %v2346, %v2343
          %v2383 = vpack.c.bf16 %v2347, %v2344
          %v2384 = vpack.c.bf16 %v2348, %v2345
          %v2385 = vpack.c.bf16 %v2352, %v2349
          %v2386 = vpack.c.bf16 %v2353, %v2350
          %v2387 = vpack.c.bf16 %v2354, %v2351
          %v2394 = vunpack.c.l.b16 %v2382
          %v2395 = vunpack.c.l.b16 %v2383
          %v2396 = vunpack.c.l.b16 %v2384
          %v2397 = vunpack.c.h.b16 %v2382
          %v2398 = vunpack.c.h.b16 %v2383
          %v2399 = vunpack.c.h.b16 %v2384
          %v2400 = vunpack.c.l.b16 %v2385
          %v2401 = vunpack.c.l.b16 %v2386
          %v2402 = vunpack.c.l.b16 %v2387
          %v2403 = vunpack.c.h.b16 %v2385
          %v2404 = vunpack.c.h.b16 %v2386
          %v2405 = vunpack.c.h.b16 %v2387
          %v2406 = vpack.c.b16 %v2395, %v2394
          %v2407 = vpack.c.b16 %v2396, %v2396
          %v2408 = vpack.c.b16 %v2398, %v2397
          %v2409 = vpack.c.b16 %v2399, %v2399
          %v2410 = vpack.c.b16 %v2401, %v2400
          %v2411 = vpack.c.b16 %v2402, %v2402
          %v2412 = vpack.c.b16 %v2404, %v2403
          %v2413 = vpack.c.b16 %v2405, %v2405
          %2422 = vst [vmem:[#allocation2 + $0x4] sm:$0xff] %v2406
          %2423 = vst.msk [vmem:[#allocation2 + $0xc] sm:$0xf] %vm334, %v2407
          %2424 = vst [vmem:[#allocation2 + $0x14] sm:$0xff] %v2408
          %2425 = vst.msk [vmem:[#allocation2 + $0x1c] sm:$0xf] %vm334, %v2409
          %2426 = vst [vmem:[#allocation2 + $0x24] sm:$0xff] %v2410
          %2427 = vst.msk [vmem:[#allocation2 + $0x2c] sm:$0xf] %vm334, %v2411
          %2428 = vst [vmem:[#allocation2 + $0x34] sm:$0xff] %v2412
          %2429 = vst.msk [vmem:[#allocation2 + $0x3c] sm:$0xf] %vm334, %v2413
        $region41: #{tpu_custom_call.1} parent=35 // loop_footer
          %s228 = sadd.s32 1, %s224
        $region42: #{tpu_custom_call.1} parent=35 // loop_footer_branch
          %223 = sbr.rel target = $region38
        $region43: #{tpu_custom_call.1} parent=35 // loop_exit
          _
        %s2430 = sand.u32 %s115, 1
        %s2431 = scalar_lea.sflag [#allocation6], %s2430
        %s2432 = sand.u32 %s115, 1
        %s2433 = smul.addr %s2432, 768
        %s2434 = scalar_lea.vmem [#allocation5], %s2433
        // Predicated region
        $region44: #{tpu_custom_call.1} parent=35 // pred_check
          %p2435 = pneg %p125
        $region45: #{tpu_custom_call.1} parent=35 // pred_check_branch
          %2437 = sbr.rel (%p2435) target = $region47
        $region46: #{tpu_custom_call.1} parent=35 // pred_region
          %s2439 = ssub.s32 12288, 12288
          %2440 = vsyncadd %s2431, %s2439
          %s2441 = smul.addr %s18, 96
          %s2442 = smul.addr %s2441, 128
          %s2443 = scalar_lea.hbm %s4, %s2442
          %s2444 = sshll.u32 %s2434, 4
          %s2445 = int_to_ptr.vmem [resolvable:$true] %s2444
          %2450 = dma.vmem_to_hbm [thread:$0]  %s2445, 12288, %s2443, %s2431, 384, 384, 24
        $region47: #{tpu_custom_call.1} parent=35 // pred_fallthru
          _
      $region36: #{tpu_custom_call.1} parent=5 // pred_fallthru
        _
      %p2451 = scmp.le.s32.totalorder 2, %s13
      // Predicated region
      $region48: #{tpu_custom_call.1} parent=5 // pred_check
        %p2452 = pneg %p2451
      $region49: #{tpu_custom_call.1} parent=5 // pred_check_branch
        %2454 = sbr.rel (%p2452) target = $region51
      $region50: #{tpu_custom_call.1} parent=5 // pred_region
        %s2455 = ssub.s32 %s13, 2
        // Predicated region
        $region52: #{tpu_custom_call.1} parent=50 // pred_check
          %p2456 = pneg %p131
        $region53: #{tpu_custom_call.1} parent=50 // pred_check_branch
          %2458 = sbr.rel (%p2456) target = $region55
        $region54: #{tpu_custom_call.1} parent=50 // pred_region
          %s2459 = sand.u32 %s116, 1
          %s2460 = scalar_lea.sflag [#allocation6], %s2459
          %s2461 = sand.u32 %s116, 1
          %s2462 = smul.addr %s2461, 768
          %s2463 = scalar_lea.vmem [#allocation5], %s2462
          %2464 = dma.done %s2460, 12288
        $region55: #{tpu_custom_call.1} parent=50 // pred_fallthru
          _
      $region51: #{tpu_custom_call.1} parent=5 // pred_fallthru
        _
    $region6: #{tpu_custom_call.1} parent=1 // loop_footer
      %s17 = sadd.s32 1, %s13
    $region7: #{tpu_custom_call.1} parent=1 // loop_footer_branch
      %12 = sbr.rel target = $region3
    $region8: #{tpu_custom_call.1} parent=1 // loop_exit
      _
    %2465 = vsyncpa [#allocation6], 1
    %s2466 = scalar_lea.sflag [#allocation6], 1
    %2467 = vsyncpa %s2466, 1

</llo_original>
